<compile_context>
chip_gen: v5e
topology: v5e:2x2
jax: 0.10.0
libtpu: 0.0.40
codegen_flags: <defaults>
</compile_context>

<pallas_src>
import functools
import math

import jax
import jax.numpy as jnp
from jax.experimental import pallas as pl
from jax.experimental.pallas import tpu as pltpu


_VMEM_LIMIT_BYTES = 48 * 1024 * 1024  # scoped-VMEM limit; headroom on v7x (64 MiB/TC)


# ----------------------------------------------------------------------------
# Pallas kernel (whole CoAttention forward, one batch per grid step)
# ----------------------------------------------------------------------------
def _softmax_last(s):
    # s is f32 (S, S); keep all softmax statistics in f32 (required on v5e).
    m = jnp.max(s, axis=-1, keepdims=True)
    e = jnp.exp(s - m)
    denom = jnp.sum(e, axis=-1, keepdims=True)
    return e * pl.reciprocal(denom, approx=True)  # EUP slot, effectively free


def coattn_fused_kernel(q1_ref, k1_ref, v1_ref, q2_ref, k2_ref, v2_ref,
                        wq_ref, wk_ref, wv_ref, wo_ref, b_ref, o_ref, *,
                        num_heads, head_dim, dot_dtype):
    # x refs: (1, S, E) block for one batch; w refs: (E, E) pre-transposed
    # (in, out); b_ref: (4, E) f32 = [bq, bk, bv, bo].
    scale = 1.0 / math.sqrt(head_dim)

    bq = b_ref[0:1, :]
    bk = b_ref[1:2, :]
    bv = b_ref[2:3, :]
    bo = b_ref[3:4, :]

    def proj(x_ref, w_ref, bias):
        x = x_ref[0].astype(dot_dtype)                      # (S, E)
        return jnp.dot(x, w_ref[...],
                       preferred_element_type=jnp.float32) + bias  # f32 (S, E)

    Q1 = proj(q1_ref, wq_ref, bq)
    Q2 = proj(q2_ref, wq_ref, bq)
    K1 = proj(k1_ref, wk_ref, bk)
    K2 = proj(k2_ref, wk_ref, bk)
    V1 = proj(v1_ref, wv_ref, bv)
    V2 = proj(v2_ref, wv_ref, bv)

    # 'qd,kd->qk': contract last dims directly -- no explicit K transpose.
    dn = (((1,), (1,)), ((), ()))

    out_heads = []
    for h in range(num_heads):  # static unroll over heads
        c0 = h * head_dim
        c1 = c0 + head_dim
        q1h = (Q1[:, c0:c1] * scale).astype(dot_dtype)  # scale folded into Q
        q2h = (Q2[:, c0:c1] * scale).astype(dot_dtype)
        k1h = K1[:, c0:c1].astype(dot_dtype)
        k2h = K2[:, c0:c1].astype(dot_dtype)
        v1h = V1[:, c0:c1].astype(dot_dtype)
        v2h = V2[:, c0:c1].astype(dot_dtype)

        s1 = jax.lax.dot_general(q1h, k2h, dn, preferred_element_type=jnp.float32)
        s2 = jax.lax.dot_general(q2h, k1h, dn, preferred_element_type=jnp.float32)

        # TODO(synk): optional attention mask (mask == 0 -> -inf) goes here.

        a1 = _softmax_last(s1)
        a2 = _softmax_last(s2)

        oh = (
            jnp.dot(a1.astype(dot_dtype), v2h, preferred_element_type=jnp.float32)
            + jnp.dot(a2.astype(dot_dtype), v1h, preferred_element_type=jnp.float32)
        )
        out_heads.append(oh)

    # Lane-dense (S, E): heads contiguous along last dim -> no head transpose.
    attn = jnp.concatenate(out_heads, axis=-1)

    # Fused output projection: attention output never touches HBM.
    out = jnp.dot(attn.astype(dot_dtype), wo_ref[...],
                  preferred_element_type=jnp.float32) + bo
    o_ref[0] = out.astype(o_ref.dtype)


# ----------------------------------------------------------------------------
# Wrapper
# ----------------------------------------------------------------------------
def co_attention_forward(params, query1, key1, value1, query2, key2, value2,
                         num_heads, *, dot_dtype=jnp.float32,
                         out_dtype=jnp.float32):
    B, S, E = query1.shape
    D = E // num_heads

    # One-time per call: transpose (and optionally down-cast) each weight so
    # the kernel does plain x @ wT with no per-tile transpose work.
    wqT = params["wq"].T.astype(dot_dtype)
    wkT = params["wk"].T.astype(dot_dtype)
    wvT = params["wv"].T.astype(dot_dtype)
    woT = params["wo"].T.astype(dot_dtype)
    biases = jnp.stack(
        [params["bq"], params["bk"], params["bv"], params["bo"]]
    ).astype(jnp.float32)  # (4, E)

    x_spec = pl.BlockSpec((1, S, E), lambda b: (b, 0, 0))
    w_spec = pl.BlockSpec((E, E), lambda b: (0, 0))   # constant index -> DMA elided
    b_spec = pl.BlockSpec((4, E), lambda b: (0, 0))

    kernel = functools.partial(
        coattn_fused_kernel, num_heads=num_heads, head_dim=D, dot_dtype=dot_dtype
    )

    in_bytes = jnp.dtype(query1.dtype).itemsize
    w_bytes = jnp.dtype(dot_dtype).itemsize
    cost = pl.CostEstimate(
        flops=B * (14 * S * E * E + num_heads * 8 * S * S * D),
        transcendentals=2 * B * num_heads * S * S,
        bytes_accessed=(6 * B * S * E * in_bytes + 4 * E * E * w_bytes
                        + 4 * E * 4
                        + B * S * E * jnp.dtype(out_dtype).itemsize),
    )

    return pl.pallas_call(
        kernel,
        out_shape=jax.ShapeDtypeStruct((B, S, E), out_dtype),
        grid=(B,),
        in_specs=[x_spec] * 6 + [w_spec] * 4 + [b_spec],
        out_specs=x_spec,
        compiler_params=pltpu.CompilerParams(
            dimension_semantics=("parallel",),   # batches shard over v7x's 2 TCs
            vmem_limit_bytes=_VMEM_LIMIT_BYTES,
        ),
        cost_estimate=cost,
    )(query1, key1, value1, query2, key2, value2, wqT, wkT, wvT, woT, biases)


# ----------------------------------------------------------------------------
# Pure-JAX reference (for correctness check)
# ----------------------------------------------------------------------------
def co_attention_ref(params, q1, k1, v1, q2, k2, v2, num_heads):
    B, S, E = q1.shape
    H = num_heads
    D = E // H

    def lin(x, w, b):
        return x @ w.T + b

    def heads(x):
        return x.reshape(B, S, H, D).transpose(0, 2, 1, 3)

    Q1 = heads(lin(q1, params["wq"], params["bq"]))
    K1 = heads(lin(k1, params["wk"], params["bk"]))
    V1 = heads(lin(v1, params["wv"], params["bv"]))
    Q2 = heads(lin(q2, params["wq"], params["bq"]))
    K2 = heads(lin(k2, params["wk"], params["bk"]))
    V2 = heads(lin(v2, params["wv"], params["bv"]))

    s1 = jnp.einsum("bhqd,bhkd->bhqk", Q1, K2) / math.sqrt(D)
    s2 = jnp.einsum("bhqd,bhkd->bhqk", Q2, K1) / math.sqrt(D)
    a1 = jax.nn.softmax(s1, axis=-1)
    a2 = jax.nn.softmax(s2, axis=-1)
    o = jnp.einsum("bhqk,bhkd->bhqd", a1, V2) + jnp.einsum("bhqk,bhkd->bhqd", a2, V1)
    o = o.transpose(0, 2, 1, 3).reshape(B, S, E)
    return lin(o, params["wo"], params["bo"])


# ----------------------------------------------------------------------------
# Main
# ----------------------------------------------------------------------------
if __name__ == "__main__":
    B, S, E, H = 2, 8, 32, 4

    key = jax.random.PRNGKey(0)
    keys = jax.random.split(key, 14)

    bound = 1.0 / math.sqrt(E)  # PyTorch nn.Linear default init range

    def u(k, shape):
        return jax.random.uniform(k, shape, jnp.float32, -bound, bound)

    params = {
        "wq": u(keys[0], (E, E)), "bq": u(keys[1], (E,)),
        "wk": u(keys[2], (E, E)), "bk": u(keys[3], (E,)),
        "wv": u(keys[4], (E, E)), "bv": u(keys[5], (E,)),
        "wo": u(keys[6], (E, E)), "bo": u(keys[7], (E,)),
    }

    query1 = jax.random.normal(keys[8], (B, S, E), jnp.float32)
    key1 = jax.random.normal(keys[9], (B, S, E), jnp.float32)
    value1 = jax.random.normal(keys[10], (B, S, E), jnp.float32)
    query2 = jax.random.normal(keys[11], (B, S, E), jnp.float32)
    key2 = jax.random.normal(keys[12], (B, S, E), jnp.float32)
    value2 = jax.random.normal(keys[13], (B, S, E), jnp.float32)

    ref = co_attention_ref(params, query1, key1, value1,
                           query2, key2, value2, num_heads=H)

    # f32 path (tolerance covers the EUP approximate reciprocal in the softmax).
    out_f32 = co_attention_forward(params, query1, key1, value1,
                                   query2, key2, value2, num_heads=H,
                                   dot_dtype=jnp.float32)
    out_f32 = jax.block_until_ready(out_f32)
    if not bool(jnp.allclose(out_f32, ref, atol=2e-2, rtol=2e-2)):
        err = float(jnp.max(jnp.abs(out_f32 - ref)))
        raise AssertionError(f"f32 Pallas output does not match reference (max abs err {err})")

    # bf16 MXU path: bf16 matmul operands, f32 accumulation and f32 softmax
    # statistics -> looser tolerance vs the f32 reference.
    out_bf16 = co_attention_forward(params, query1, key1, value1,
                                    query2, key2, value2, num_heads=H,
                                    dot_dtype=jnp.bfloat16)
    out_bf16 = jax.block_until_ready(out_bf16)
    if not bool(jnp.allclose(out_bf16.astype(jnp.float32), ref, atol=7e-2, rtol=7e-2)):
        err = float(jnp.max(jnp.abs(out_bf16.astype(jnp.float32) - ref)))
        raise AssertionError(f"bf16 Pallas output does not match reference (max abs err {err})")

    print("KERNEL_OK")
</pallas_src>

<mosaic_0001>
module attributes {stable_mosaic.version = 11 : i64} {
  func.func @coattn_fused_kernel(%arg0: i32, %arg1: memref<1x8x32xf32, #tpu.memory_space<vmem>>, %arg2: memref<1x8x32xf32, #tpu.memory_space<vmem>>, %arg3: memref<1x8x32xf32, #tpu.memory_space<vmem>>, %arg4: memref<1x8x32xf32, #tpu.memory_space<vmem>>, %arg5: memref<1x8x32xf32, #tpu.memory_space<vmem>>, %arg6: memref<1x8x32xf32, #tpu.memory_space<vmem>>, %arg7: memref<32x32xf32, #tpu.memory_space<vmem>>, %arg8: memref<32x32xf32, #tpu.memory_space<vmem>>, %arg9: memref<32x32xf32, #tpu.memory_space<vmem>>, %arg10: memref<32x32xf32, #tpu.memory_space<vmem>>, %arg11: memref<4x32xf32, #tpu.memory_space<vmem>>, %arg12: memref<1x8x32xf32, #tpu.memory_space<vmem>>) attributes {dimension_semantics = [#tpu.dimension_semantics<parallel>], iteration_bounds = array<i64: 2>, scalar_prefetch = 0 : i64, scratch_operands = 0 : i64, tpu.core_type = #tpu.core_type<tc>, window_params = [{transform_indices = @transform_0, window_bounds = array<i64: 1, 8, 32>}, {transform_indices = @transform_1, window_bounds = array<i64: 1, 8, 32>}, {transform_indices = @transform_2, window_bounds = array<i64: 1, 8, 32>}, {transform_indices = @transform_3, window_bounds = array<i64: 1, 8, 32>}, {transform_indices = @transform_4, window_bounds = array<i64: 1, 8, 32>}, {transform_indices = @transform_5, window_bounds = array<i64: 1, 8, 32>}, {pipeline_mode = #tpu.pipeline_mode<synchronous>, transform_indices = @transform_6, window_bounds = array<i64: 32, 32>}, {pipeline_mode = #tpu.pipeline_mode<synchronous>, transform_indices = @transform_7, window_bounds = array<i64: 32, 32>}, {pipeline_mode = #tpu.pipeline_mode<synchronous>, transform_indices = @transform_8, window_bounds = array<i64: 32, 32>}, {pipeline_mode = #tpu.pipeline_mode<synchronous>, transform_indices = @transform_9, window_bounds = array<i64: 32, 32>}, {pipeline_mode = #tpu.pipeline_mode<synchronous>, transform_indices = @transform_10, window_bounds = array<i64: 4, 32>}, {transform_indices = @transform_11, window_bounds = array<i64: 1, 8, 32>}]} {
    %c0 = arith.constant 0 : index
    %c0_0 = arith.constant 0 : index
    %0 = vector.load %arg11[%c0, %c0_0] : memref<4x32xf32, #tpu.memory_space<vmem>>, vector<1x32xf32>
    %c1 = arith.constant 1 : index
    %c0_1 = arith.constant 0 : index
    %1 = vector.load %arg11[%c1, %c0_1] : memref<4x32xf32, #tpu.memory_space<vmem>>, vector<1x32xf32>
    %c2 = arith.constant 2 : index
    %c0_2 = arith.constant 0 : index
    %2 = vector.load %arg11[%c2, %c0_2] : memref<4x32xf32, #tpu.memory_space<vmem>>, vector<1x32xf32>
    %c3 = arith.constant 3 : index
    %c0_3 = arith.constant 0 : index
    %3 = vector.load %arg11[%c3, %c0_3] : memref<4x32xf32, #tpu.memory_space<vmem>>, vector<1x32xf32>
    %c0_4 = arith.constant 0 : index
    %c0_5 = arith.constant 0 : index
    %c0_6 = arith.constant 0 : index
    %4 = vector.load %arg1[%c0_4, %c0_5, %c0_6] : memref<1x8x32xf32, #tpu.memory_space<vmem>>, vector<1x8x32xf32>
    %5 = vector.shape_cast %4 : vector<1x8x32xf32> to vector<8x32xf32>
    %c0_7 = arith.constant 0 : index
    %c0_8 = arith.constant 0 : index
    %6 = vector.load %arg7[%c0_7, %c0_8] : memref<32x32xf32, #tpu.memory_space<vmem>>, vector<32x32xf32>
    %cst = arith.constant dense<0.000000e+00> : vector<8x32xf32>
    %7 = tpu.matmul %5, %6, %cst {dimension_numbers = #tpu.dot_dimension_numbers<[1], [0], [0], [1], [0, 0, 1, 1], [], []>} : vector<8x32xf32>, vector<32x32xf32>, vector<8x32xf32> -> vector<8x32xf32>
    %8 = vector.broadcast %0 : vector<1x32xf32> to vector<8x32xf32>
    %9 = arith.addf %7, %8 : vector<8x32xf32>
    %c0_9 = arith.constant 0 : index
    %c0_10 = arith.constant 0 : index
    %c0_11 = arith.constant 0 : index
    %10 = vector.load %arg4[%c0_9, %c0_10, %c0_11] : memref<1x8x32xf32, #tpu.memory_space<vmem>>, vector<1x8x32xf32>
    %11 = vector.shape_cast %10 : vector<1x8x32xf32> to vector<8x32xf32>
    %c0_12 = arith.constant 0 : index
    %c0_13 = arith.constant 0 : index
    %12 = vector.load %arg7[%c0_12, %c0_13] : memref<32x32xf32, #tpu.memory_space<vmem>>, vector<32x32xf32>
    %cst_14 = arith.constant dense<0.000000e+00> : vector<8x32xf32>
    %13 = tpu.matmul %11, %12, %cst_14 {dimension_numbers = #tpu.dot_dimension_numbers<[1], [0], [0], [1], [0, 0, 1, 1], [], []>} : vector<8x32xf32>, vector<32x32xf32>, vector<8x32xf32> -> vector<8x32xf32>
    %14 = vector.broadcast %0 : vector<1x32xf32> to vector<8x32xf32>
    %15 = arith.addf %13, %14 : vector<8x32xf32>
    %c0_15 = arith.constant 0 : index
    %c0_16 = arith.constant 0 : index
    %c0_17 = arith.constant 0 : index
    %16 = vector.load %arg2[%c0_15, %c0_16, %c0_17] : memref<1x8x32xf32, #tpu.memory_space<vmem>>, vector<1x8x32xf32>
    %17 = vector.shape_cast %16 : vector<1x8x32xf32> to vector<8x32xf32>
    %c0_18 = arith.constant 0 : index
    %c0_19 = arith.constant 0 : index
    %18 = vector.load %arg8[%c0_18, %c0_19] : memref<32x32xf32, #tpu.memory_space<vmem>>, vector<32x32xf32>
    %cst_20 = arith.constant dense<0.000000e+00> : vector<8x32xf32>
    %19 = tpu.matmul %17, %18, %cst_20 {dimension_numbers = #tpu.dot_dimension_numbers<[1], [0], [0], [1], [0, 0, 1, 1], [], []>} : vector<8x32xf32>, vector<32x32xf32>, vector<8x32xf32> -> vector<8x32xf32>
    %20 = vector.broadcast %1 : vector<1x32xf32> to vector<8x32xf32>
    %21 = arith.addf %19, %20 : vector<8x32xf32>
    %c0_21 = arith.constant 0 : index
    %c0_22 = arith.constant 0 : index
    %c0_23 = arith.constant 0 : index
    %22 = vector.load %arg5[%c0_21, %c0_22, %c0_23] : memref<1x8x32xf32, #tpu.memory_space<vmem>>, vector<1x8x32xf32>
    %23 = vector.shape_cast %22 : vector<1x8x32xf32> to vector<8x32xf32>
    %c0_24 = arith.constant 0 : index
    %c0_25 = arith.constant 0 : index
    %24 = vector.load %arg8[%c0_24, %c0_25] : memref<32x32xf32, #tpu.memory_space<vmem>>, vector<32x32xf32>
    %cst_26 = arith.constant dense<0.000000e+00> : vector<8x32xf32>
    %25 = tpu.matmul %23, %24, %cst_26 {dimension_numbers = #tpu.dot_dimension_numbers<[1], [0], [0], [1], [0, 0, 1, 1], [], []>} : vector<8x32xf32>, vector<32x32xf32>, vector<8x32xf32> -> vector<8x32xf32>
    %26 = vector.broadcast %1 : vector<1x32xf32> to vector<8x32xf32>
    %27 = arith.addf %25, %26 : vector<8x32xf32>
    %c0_27 = arith.constant 0 : index
    %c0_28 = arith.constant 0 : index
    %c0_29 = arith.constant 0 : index
    %28 = vector.load %arg3[%c0_27, %c0_28, %c0_29] : memref<1x8x32xf32, #tpu.memory_space<vmem>>, vector<1x8x32xf32>
    %29 = vector.shape_cast %28 : vector<1x8x32xf32> to vector<8x32xf32>
    %c0_30 = arith.constant 0 : index
    %c0_31 = arith.constant 0 : index
    %30 = vector.load %arg9[%c0_30, %c0_31] : memref<32x32xf32, #tpu.memory_space<vmem>>, vector<32x32xf32>
    %cst_32 = arith.constant dense<0.000000e+00> : vector<8x32xf32>
    %31 = tpu.matmul %29, %30, %cst_32 {dimension_numbers = #tpu.dot_dimension_numbers<[1], [0], [0], [1], [0, 0, 1, 1], [], []>} : vector<8x32xf32>, vector<32x32xf32>, vector<8x32xf32> -> vector<8x32xf32>
    %32 = vector.broadcast %2 : vector<1x32xf32> to vector<8x32xf32>
    %33 = arith.addf %31, %32 : vector<8x32xf32>
    %c0_33 = arith.constant 0 : index
    %c0_34 = arith.constant 0 : index
    %c0_35 = arith.constant 0 : index
    %34 = vector.load %arg6[%c0_33, %c0_34, %c0_35] : memref<1x8x32xf32, #tpu.memory_space<vmem>>, vector<1x8x32xf32>
    %35 = vector.shape_cast %34 : vector<1x8x32xf32> to vector<8x32xf32>
    %c0_36 = arith.constant 0 : index
    %c0_37 = arith.constant 0 : index
    %36 = vector.load %arg9[%c0_36, %c0_37] : memref<32x32xf32, #tpu.memory_space<vmem>>, vector<32x32xf32>
    %cst_38 = arith.constant dense<0.000000e+00> : vector<8x32xf32>
    %37 = tpu.matmul %35, %36, %cst_38 {dimension_numbers = #tpu.dot_dimension_numbers<[1], [0], [0], [1], [0, 0, 1, 1], [], []>} : vector<8x32xf32>, vector<32x32xf32>, vector<8x32xf32> -> vector<8x32xf32>
    %38 = vector.broadcast %2 : vector<1x32xf32> to vector<8x32xf32>
    %39 = arith.addf %37, %38 : vector<8x32xf32>
    %40 = vector.extract_strided_slice %9 {offsets = [0, 0], sizes = [8, 8], strides = [1, 1]} : vector<8x32xf32> to vector<8x8xf32>
    %cst_39 = arith.constant 0.353553385 : f32
    %41 = vector.broadcast %cst_39 : f32 to vector<8x8xf32>
    %42 = arith.mulf %40, %41 : vector<8x8xf32>
    %43 = vector.extract_strided_slice %15 {offsets = [0, 0], sizes = [8, 8], strides = [1, 1]} : vector<8x32xf32> to vector<8x8xf32>
    %cst_40 = arith.constant 0.353553385 : f32
    %44 = vector.broadcast %cst_40 : f32 to vector<8x8xf32>
    %45 = arith.mulf %43, %44 : vector<8x8xf32>
    %46 = vector.extract_strided_slice %21 {offsets = [0, 0], sizes = [8, 8], strides = [1, 1]} : vector<8x32xf32> to vector<8x8xf32>
    %47 = vector.extract_strided_slice %27 {offsets = [0, 0], sizes = [8, 8], strides = [1, 1]} : vector<8x32xf32> to vector<8x8xf32>
    %48 = vector.extract_strided_slice %33 {offsets = [0, 0], sizes = [8, 8], strides = [1, 1]} : vector<8x32xf32> to vector<8x8xf32>
    %49 = vector.extract_strided_slice %39 {offsets = [0, 0], sizes = [8, 8], strides = [1, 1]} : vector<8x32xf32> to vector<8x8xf32>
    %cst_41 = arith.constant dense<0.000000e+00> : vector<8x8xf32>
    %50 = tpu.matmul %42, %47, %cst_41 {dimension_numbers = #tpu.dot_dimension_numbers<[1], [1], [0], [0], [0, 0, 1, 0], [], []>} : vector<8x8xf32>, vector<8x8xf32>, vector<8x8xf32> -> vector<8x8xf32>
    %cst_42 = arith.constant dense<0.000000e+00> : vector<8x8xf32>
    %51 = tpu.matmul %45, %46, %cst_42 {dimension_numbers = #tpu.dot_dimension_numbers<[1], [1], [0], [0], [0, 0, 1, 0], [], []>} : vector<8x8xf32>, vector<8x8xf32>, vector<8x8xf32> -> vector<8x8xf32>
    %cst_43 = arith.constant dense<0xFF800000> : vector<8xf32>
    %52 = vector.multi_reduction <maximumf>, %50, %cst_43 [1] : vector<8x8xf32> to vector<8xf32>
    %53 = vector.shape_cast %52 : vector<8xf32> to vector<8x1xf32>
    %54 = vector.broadcast %53 : vector<8x1xf32> to vector<8x8xf32>
    %55 = arith.subf %50, %54 : vector<8x8xf32>
    %56 = math.exp %55 : vector<8x8xf32>
    %cst_44 = arith.constant dense<0.000000e+00> : vector<8xf32>
    %57 = vector.multi_reduction <add>, %56, %cst_44 [1] : vector<8x8xf32> to vector<8xf32>
    %58 = vector.shape_cast %57 : vector<8xf32> to vector<8x1xf32>
    %59 = tpu.reciprocal %58 {approx = true} : vector<8x1xf32> -> vector<8x1xf32>
    %60 = vector.broadcast %59 : vector<8x1xf32> to vector<8x8xf32>
    %61 = arith.mulf %56, %60 : vector<8x8xf32>
    %cst_45 = arith.constant dense<0xFF800000> : vector<8xf32>
    %62 = vector.multi_reduction <maximumf>, %51, %cst_45 [1] : vector<8x8xf32> to vector<8xf32>
    %63 = vector.shape_cast %62 : vector<8xf32> to vector<8x1xf32>
    %64 = vector.broadcast %63 : vector<8x1xf32> to vector<8x8xf32>
    %65 = arith.subf %51, %64 : vector<8x8xf32>
    %66 = math.exp %65 : vector<8x8xf32>
    %cst_46 = arith.constant dense<0.000000e+00> : vector<8xf32>
    %67 = vector.multi_reduction <add>, %66, %cst_46 [1] : vector<8x8xf32> to vector<8xf32>
    %68 = vector.shape_cast %67 : vector<8xf32> to vector<8x1xf32>
    %69 = tpu.reciprocal %68 {approx = true} : vector<8x1xf32> -> vector<8x1xf32>
    %70 = vector.broadcast %69 : vector<8x1xf32> to vector<8x8xf32>
    %71 = arith.mulf %66, %70 : vector<8x8xf32>
    %cst_47 = arith.constant dense<0.000000e+00> : vector<8x8xf32>
    %72 = tpu.matmul %61, %49, %cst_47 {dimension_numbers = #tpu.dot_dimension_numbers<[1], [0], [0], [1], [0, 0, 1, 1], [], []>} : vector<8x8xf32>, vector<8x8xf32>, vector<8x8xf32> -> vector<8x8xf32>
    %cst_48 = arith.constant dense<0.000000e+00> : vector<8x8xf32>
    %73 = tpu.matmul %71, %48, %cst_48 {dimension_numbers = #tpu.dot_dimension_numbers<[1], [0], [0], [1], [0, 0, 1, 1], [], []>} : vector<8x8xf32>, vector<8x8xf32>, vector<8x8xf32> -> vector<8x8xf32>
    %74 = arith.addf %72, %73 : vector<8x8xf32>
    %75 = vector.extract_strided_slice %9 {offsets = [0, 8], sizes = [8, 8], strides = [1, 1]} : vector<8x32xf32> to vector<8x8xf32>
    %cst_49 = arith.constant 0.353553385 : f32
    %76 = vector.broadcast %cst_49 : f32 to vector<8x8xf32>
    %77 = arith.mulf %75, %76 : vector<8x8xf32>
    %78 = vector.extract_strided_slice %15 {offsets = [0, 8], sizes = [8, 8], strides = [1, 1]} : vector<8x32xf32> to vector<8x8xf32>
    %cst_50 = arith.constant 0.353553385 : f32
    %79 = vector.broadcast %cst_50 : f32 to vector<8x8xf32>
    %80 = arith.mulf %78, %79 : vector<8x8xf32>
    %81 = vector.extract_strided_slice %21 {offsets = [0, 8], sizes = [8, 8], strides = [1, 1]} : vector<8x32xf32> to vector<8x8xf32>
    %82 = vector.extract_strided_slice %27 {offsets = [0, 8], sizes = [8, 8], strides = [1, 1]} : vector<8x32xf32> to vector<8x8xf32>
    %83 = vector.extract_strided_slice %33 {offsets = [0, 8], sizes = [8, 8], strides = [1, 1]} : vector<8x32xf32> to vector<8x8xf32>
    %84 = vector.extract_strided_slice %39 {offsets = [0, 8], sizes = [8, 8], strides = [1, 1]} : vector<8x32xf32> to vector<8x8xf32>
    %cst_51 = arith.constant dense<0.000000e+00> : vector<8x8xf32>
    %85 = tpu.matmul %77, %82, %cst_51 {dimension_numbers = #tpu.dot_dimension_numbers<[1], [1], [0], [0], [0, 0, 1, 0], [], []>} : vector<8x8xf32>, vector<8x8xf32>, vector<8x8xf32> -> vector<8x8xf32>
    %cst_52 = arith.constant dense<0.000000e+00> : vector<8x8xf32>
    %86 = tpu.matmul %80, %81, %cst_52 {dimension_numbers = #tpu.dot_dimension_numbers<[1], [1], [0], [0], [0, 0, 1, 0], [], []>} : vector<8x8xf32>, vector<8x8xf32>, vector<8x8xf32> -> vector<8x8xf32>
    %cst_53 = arith.constant dense<0xFF800000> : vector<8xf32>
    %87 = vector.multi_reduction <maximumf>, %85, %cst_53 [1] : vector<8x8xf32> to vector<8xf32>
    %88 = vector.shape_cast %87 : vector<8xf32> to vector<8x1xf32>
    %89 = vector.broadcast %88 : vector<8x1xf32> to vector<8x8xf32>
    %90 = arith.subf %85, %89 : vector<8x8xf32>
    %91 = math.exp %90 : vector<8x8xf32>
    %cst_54 = arith.constant dense<0.000000e+00> : vector<8xf32>
    %92 = vector.multi_reduction <add>, %91, %cst_54 [1] : vector<8x8xf32> to vector<8xf32>
    %93 = vector.shape_cast %92 : vector<8xf32> to vector<8x1xf32>
    %94 = tpu.reciprocal %93 {approx = true} : vector<8x1xf32> -> vector<8x1xf32>
    %95 = vector.broadcast %94 : vector<8x1xf32> to vector<8x8xf32>
    %96 = arith.mulf %91, %95 : vector<8x8xf32>
    %cst_55 = arith.constant dense<0xFF800000> : vector<8xf32>
    %97 = vector.multi_reduction <maximumf>, %86, %cst_55 [1] : vector<8x8xf32> to vector<8xf32>
    %98 = vector.shape_cast %97 : vector<8xf32> to vector<8x1xf32>
    %99 = vector.broadcast %98 : vector<8x1xf32> to vector<8x8xf32>
    %100 = arith.subf %86, %99 : vector<8x8xf32>
    %101 = math.exp %100 : vector<8x8xf32>
    %cst_56 = arith.constant dense<0.000000e+00> : vector<8xf32>
    %102 = vector.multi_reduction <add>, %101, %cst_56 [1] : vector<8x8xf32> to vector<8xf32>
    %103 = vector.shape_cast %102 : vector<8xf32> to vector<8x1xf32>
    %104 = tpu.reciprocal %103 {approx = true} : vector<8x1xf32> -> vector<8x1xf32>
    %105 = vector.broadcast %104 : vector<8x1xf32> to vector<8x8xf32>
    %106 = arith.mulf %101, %105 : vector<8x8xf32>
    %cst_57 = arith.constant dense<0.000000e+00> : vector<8x8xf32>
    %107 = tpu.matmul %96, %84, %cst_57 {dimension_numbers = #tpu.dot_dimension_numbers<[1], [0], [0], [1], [0, 0, 1, 1], [], []>} : vector<8x8xf32>, vector<8x8xf32>, vector<8x8xf32> -> vector<8x8xf32>
    %cst_58 = arith.constant dense<0.000000e+00> : vector<8x8xf32>
    %108 = tpu.matmul %106, %83, %cst_58 {dimension_numbers = #tpu.dot_dimension_numbers<[1], [0], [0], [1], [0, 0, 1, 1], [], []>} : vector<8x8xf32>, vector<8x8xf32>, vector<8x8xf32> -> vector<8x8xf32>
    %109 = arith.addf %107, %108 : vector<8x8xf32>
    %110 = vector.extract_strided_slice %9 {offsets = [0, 16], sizes = [8, 8], strides = [1, 1]} : vector<8x32xf32> to vector<8x8xf32>
    %cst_59 = arith.constant 0.353553385 : f32
    %111 = vector.broadcast %cst_59 : f32 to vector<8x8xf32>
    %112 = arith.mulf %110, %111 : vector<8x8xf32>
    %113 = vector.extract_strided_slice %15 {offsets = [0, 16], sizes = [8, 8], strides = [1, 1]} : vector<8x32xf32> to vector<8x8xf32>
    %cst_60 = arith.constant 0.353553385 : f32
    %114 = vector.broadcast %cst_60 : f32 to vector<8x8xf32>
    %115 = arith.mulf %113, %114 : vector<8x8xf32>
    %116 = vector.extract_strided_slice %21 {offsets = [0, 16], sizes = [8, 8], strides = [1, 1]} : vector<8x32xf32> to vector<8x8xf32>
    %117 = vector.extract_strided_slice %27 {offsets = [0, 16], sizes = [8, 8], strides = [1, 1]} : vector<8x32xf32> to vector<8x8xf32>
    %118 = vector.extract_strided_slice %33 {offsets = [0, 16], sizes = [8, 8], strides = [1, 1]} : vector<8x32xf32> to vector<8x8xf32>
    %119 = vector.extract_strided_slice %39 {offsets = [0, 16], sizes = [8, 8], strides = [1, 1]} : vector<8x32xf32> to vector<8x8xf32>
    %cst_61 = arith.constant dense<0.000000e+00> : vector<8x8xf32>
    %120 = tpu.matmul %112, %117, %cst_61 {dimension_numbers = #tpu.dot_dimension_numbers<[1], [1], [0], [0], [0, 0, 1, 0], [], []>} : vector<8x8xf32>, vector<8x8xf32>, vector<8x8xf32> -> vector<8x8xf32>
    %cst_62 = arith.constant dense<0.000000e+00> : vector<8x8xf32>
    %121 = tpu.matmul %115, %116, %cst_62 {dimension_numbers = #tpu.dot_dimension_numbers<[1], [1], [0], [0], [0, 0, 1, 0], [], []>} : vector<8x8xf32>, vector<8x8xf32>, vector<8x8xf32> -> vector<8x8xf32>
    %cst_63 = arith.constant dense<0xFF800000> : vector<8xf32>
    %122 = vector.multi_reduction <maximumf>, %120, %cst_63 [1] : vector<8x8xf32> to vector<8xf32>
    %123 = vector.shape_cast %122 : vector<8xf32> to vector<8x1xf32>
    %124 = vector.broadcast %123 : vector<8x1xf32> to vector<8x8xf32>
    %125 = arith.subf %120, %124 : vector<8x8xf32>
    %126 = math.exp %125 : vector<8x8xf32>
    %cst_64 = arith.constant dense<0.000000e+00> : vector<8xf32>
    %127 = vector.multi_reduction <add>, %126, %cst_64 [1] : vector<8x8xf32> to vector<8xf32>
    %128 = vector.shape_cast %127 : vector<8xf32> to vector<8x1xf32>
    %129 = tpu.reciprocal %128 {approx = true} : vector<8x1xf32> -> vector<8x1xf32>
    %130 = vector.broadcast %129 : vector<8x1xf32> to vector<8x8xf32>
    %131 = arith.mulf %126, %130 : vector<8x8xf32>
    %cst_65 = arith.constant dense<0xFF800000> : vector<8xf32>
    %132 = vector.multi_reduction <maximumf>, %121, %cst_65 [1] : vector<8x8xf32> to vector<8xf32>
    %133 = vector.shape_cast %132 : vector<8xf32> to vector<8x1xf32>
    %134 = vector.broadcast %133 : vector<8x1xf32> to vector<8x8xf32>
    %135 = arith.subf %121, %134 : vector<8x8xf32>
    %136 = math.exp %135 : vector<8x8xf32>
    %cst_66 = arith.constant dense<0.000000e+00> : vector<8xf32>
    %137 = vector.multi_reduction <add>, %136, %cst_66 [1] : vector<8x8xf32> to vector<8xf32>
    %138 = vector.shape_cast %137 : vector<8xf32> to vector<8x1xf32>
    %139 = tpu.reciprocal %138 {approx = true} : vector<8x1xf32> -> vector<8x1xf32>
    %140 = vector.broadcast %139 : vector<8x1xf32> to vector<8x8xf32>
    %141 = arith.mulf %136, %140 : vector<8x8xf32>
    %cst_67 = arith.constant dense<0.000000e+00> : vector<8x8xf32>
    %142 = tpu.matmul %131, %119, %cst_67 {dimension_numbers = #tpu.dot_dimension_numbers<[1], [0], [0], [1], [0, 0, 1, 1], [], []>} : vector<8x8xf32>, vector<8x8xf32>, vector<8x8xf32> -> vector<8x8xf32>
    %cst_68 = arith.constant dense<0.000000e+00> : vector<8x8xf32>
    %143 = tpu.matmul %141, %118, %cst_68 {dimension_numbers = #tpu.dot_dimension_numbers<[1], [0], [0], [1], [0, 0, 1, 1], [], []>} : vector<8x8xf32>, vector<8x8xf32>, vector<8x8xf32> -> vector<8x8xf32>
    %144 = arith.addf %142, %143 : vector<8x8xf32>
    %145 = vector.extract_strided_slice %9 {offsets = [0, 24], sizes = [8, 8], strides = [1, 1]} : vector<8x32xf32> to vector<8x8xf32>
    %cst_69 = arith.constant 0.353553385 : f32
    %146 = vector.broadcast %cst_69 : f32 to vector<8x8xf32>
    %147 = arith.mulf %145, %146 : vector<8x8xf32>
    %148 = vector.extract_strided_slice %15 {offsets = [0, 24], sizes = [8, 8], strides = [1, 1]} : vector<8x32xf32> to vector<8x8xf32>
    %cst_70 = arith.constant 0.353553385 : f32
    %149 = vector.broadcast %cst_70 : f32 to vector<8x8xf32>
    %150 = arith.mulf %148, %149 : vector<8x8xf32>
    %151 = vector.extract_strided_slice %21 {offsets = [0, 24], sizes = [8, 8], strides = [1, 1]} : vector<8x32xf32> to vector<8x8xf32>
    %152 = vector.extract_strided_slice %27 {offsets = [0, 24], sizes = [8, 8], strides = [1, 1]} : vector<8x32xf32> to vector<8x8xf32>
    %153 = vector.extract_strided_slice %33 {offsets = [0, 24], sizes = [8, 8], strides = [1, 1]} : vector<8x32xf32> to vector<8x8xf32>
    %154 = vector.extract_strided_slice %39 {offsets = [0, 24], sizes = [8, 8], strides = [1, 1]} : vector<8x32xf32> to vector<8x8xf32>
    %cst_71 = arith.constant dense<0.000000e+00> : vector<8x8xf32>
    %155 = tpu.matmul %147, %152, %cst_71 {dimension_numbers = #tpu.dot_dimension_numbers<[1], [1], [0], [0], [0, 0, 1, 0], [], []>} : vector<8x8xf32>, vector<8x8xf32>, vector<8x8xf32> -> vector<8x8xf32>
    %cst_72 = arith.constant dense<0.000000e+00> : vector<8x8xf32>
    %156 = tpu.matmul %150, %151, %cst_72 {dimension_numbers = #tpu.dot_dimension_numbers<[1], [1], [0], [0], [0, 0, 1, 0], [], []>} : vector<8x8xf32>, vector<8x8xf32>, vector<8x8xf32> -> vector<8x8xf32>
    %cst_73 = arith.constant dense<0xFF800000> : vector<8xf32>
    %157 = vector.multi_reduction <maximumf>, %155, %cst_73 [1] : vector<8x8xf32> to vector<8xf32>
    %158 = vector.shape_cast %157 : vector<8xf32> to vector<8x1xf32>
    %159 = vector.broadcast %158 : vector<8x1xf32> to vector<8x8xf32>
    %160 = arith.subf %155, %159 : vector<8x8xf32>
    %161 = math.exp %160 : vector<8x8xf32>
    %cst_74 = arith.constant dense<0.000000e+00> : vector<8xf32>
    %162 = vector.multi_reduction <add>, %161, %cst_74 [1] : vector<8x8xf32> to vector<8xf32>
    %163 = vector.shape_cast %162 : vector<8xf32> to vector<8x1xf32>
    %164 = tpu.reciprocal %163 {approx = true} : vector<8x1xf32> -> vector<8x1xf32>
    %165 = vector.broadcast %164 : vector<8x1xf32> to vector<8x8xf32>
    %166 = arith.mulf %161, %165 : vector<8x8xf32>
    %cst_75 = arith.constant dense<0xFF800000> : vector<8xf32>
    %167 = vector.multi_reduction <maximumf>, %156, %cst_75 [1] : vector<8x8xf32> to vector<8xf32>
    %168 = vector.shape_cast %167 : vector<8xf32> to vector<8x1xf32>
    %169 = vector.broadcast %168 : vector<8x1xf32> to vector<8x8xf32>
    %170 = arith.subf %156, %169 : vector<8x8xf32>
    %171 = math.exp %170 : vector<8x8xf32>
    %cst_76 = arith.constant dense<0.000000e+00> : vector<8xf32>
    %172 = vector.multi_reduction <add>, %171, %cst_76 [1] : vector<8x8xf32> to vector<8xf32>
    %173 = vector.shape_cast %172 : vector<8xf32> to vector<8x1xf32>
    %174 = tpu.reciprocal %173 {approx = true} : vector<8x1xf32> -> vector<8x1xf32>
    %175 = vector.broadcast %174 : vector<8x1xf32> to vector<8x8xf32>
    %176 = arith.mulf %171, %175 : vector<8x8xf32>
    %cst_77 = arith.constant dense<0.000000e+00> : vector<8x8xf32>
    %177 = tpu.matmul %166, %154, %cst_77 {dimension_numbers = #tpu.dot_dimension_numbers<[1], [0], [0], [1], [0, 0, 1, 1], [], []>} : vector<8x8xf32>, vector<8x8xf32>, vector<8x8xf32> -> vector<8x8xf32>
    %cst_78 = arith.constant dense<0.000000e+00> : vector<8x8xf32>
    %178 = tpu.matmul %176, %153, %cst_78 {dimension_numbers = #tpu.dot_dimension_numbers<[1], [0], [0], [1], [0, 0, 1, 1], [], []>} : vector<8x8xf32>, vector<8x8xf32>, vector<8x8xf32> -> vector<8x8xf32>
    %179 = arith.addf %177, %178 : vector<8x8xf32>
    %180 = tpu.concatenate %74, %109, %144, %179 in 1 : vector<8x8xf32>, vector<8x8xf32>, vector<8x8xf32>, vector<8x8xf32> -> vector<8x32xf32>
    %c0_79 = arith.constant 0 : index
    %c0_80 = arith.constant 0 : index
    %181 = vector.load %arg10[%c0_79, %c0_80] : memref<32x32xf32, #tpu.memory_space<vmem>>, vector<32x32xf32>
    %cst_81 = arith.constant dense<0.000000e+00> : vector<8x32xf32>
    %182 = tpu.matmul %180, %181, %cst_81 {dimension_numbers = #tpu.dot_dimension_numbers<[1], [0], [0], [1], [0, 0, 1, 1], [], []>} : vector<8x32xf32>, vector<32x32xf32>, vector<8x32xf32> -> vector<8x32xf32>
    %183 = vector.broadcast %3 : vector<1x32xf32> to vector<8x32xf32>
    %184 = arith.addf %182, %183 : vector<8x32xf32>
    %c0_82 = arith.constant 0 : index
    %c0_83 = arith.constant 0 : index
    %c0_84 = arith.constant 0 : index
    %185 = vector.load %arg12[%c0_82, %c0_83, %c0_84] : memref<1x8x32xf32, #tpu.memory_space<vmem>>, vector<1x8x32xf32>
    %186 = vector.shape_cast %185 : vector<1x8x32xf32> to vector<8x32xf32>
    %187 = vector.shape_cast %184 : vector<8x32xf32> to vector<1x8x32xf32>
    tpu.vector_store %arg12[%c0_82, %c0_83, %c0_84], %187 {strides = array<i32>} : memref<1x8x32xf32, #tpu.memory_space<vmem>>, vector<1x8x32xf32>,
    return
  }
  func.func @transform_0(%arg0: i32) -> (i32, i32, i32) {
    %c0_i32 = arith.constant 0 : i32
    %c0_i32_0 = arith.constant 0 : i32
    %c0_i32_1 = arith.constant 0 : i32
    return %arg0, %c0_i32, %c0_i32_0 : i32, i32, i32
  }
  func.func @transform_1(%arg0: i32) -> (i32, i32, i32) {
    %c0_i32 = arith.constant 0 : i32
    %c0_i32_0 = arith.constant 0 : i32
    %c0_i32_1 = arith.constant 0 : i32
    return %arg0, %c0_i32, %c0_i32_0 : i32, i32, i32
  }
  func.func @transform_2(%arg0: i32) -> (i32, i32, i32) {
    %c0_i32 = arith.constant 0 : i32
    %c0_i32_0 = arith.constant 0 : i32
    %c0_i32_1 = arith.constant 0 : i32
    return %arg0, %c0_i32, %c0_i32_0 : i32, i32, i32
  }
  func.func @transform_3(%arg0: i32) -> (i32, i32, i32) {
    %c0_i32 = arith.constant 0 : i32
    %c0_i32_0 = arith.constant 0 : i32
    %c0_i32_1 = arith.constant 0 : i32
    return %arg0, %c0_i32, %c0_i32_0 : i32, i32, i32
  }
  func.func @transform_4(%arg0: i32) -> (i32, i32, i32) {
    %c0_i32 = arith.constant 0 : i32
    %c0_i32_0 = arith.constant 0 : i32
    %c0_i32_1 = arith.constant 0 : i32
    return %arg0, %c0_i32, %c0_i32_0 : i32, i32, i32
  }
  func.func @transform_5(%arg0: i32) -> (i32, i32, i32) {
    %c0_i32 = arith.constant 0 : i32
    %c0_i32_0 = arith.constant 0 : i32
    %c0_i32_1 = arith.constant 0 : i32
    return %arg0, %c0_i32, %c0_i32_0 : i32, i32, i32
  }
  func.func @transform_6(%arg0: i32) -> (i32, i32) {
    %c0_i32 = arith.constant 0 : i32
    %c0_i32_0 = arith.constant 0 : i32
    %c0_i32_1 = arith.constant 0 : i32
    return %c0_i32, %c0_i32_0 : i32, i32
  }
  func.func @transform_7(%arg0: i32) -> (i32, i32) {
    %c0_i32 = arith.constant 0 : i32
    %c0_i32_0 = arith.constant 0 : i32
    %c0_i32_1 = arith.constant 0 : i32
    return %c0_i32, %c0_i32_0 : i32, i32
  }
  func.func @transform_8(%arg0: i32) -> (i32, i32) {
    %c0_i32 = arith.constant 0 : i32
    %c0_i32_0 = arith.constant 0 : i32
    %c0_i32_1 = arith.constant 0 : i32
    return %c0_i32, %c0_i32_0 : i32, i32
  }
  func.func @transform_9(%arg0: i32) -> (i32, i32) {
    %c0_i32 = arith.constant 0 : i32
    %c0_i32_0 = arith.constant 0 : i32
    %c0_i32_1 = arith.constant 0 : i32
    return %c0_i32, %c0_i32_0 : i32, i32
  }
  func.func @transform_10(%arg0: i32) -> (i32, i32) {
    %c0_i32 = arith.constant 0 : i32
    %c0_i32_0 = arith.constant 0 : i32
    %c0_i32_1 = arith.constant 0 : i32
    return %c0_i32, %c0_i32_0 : i32, i32
  }
  func.func @transform_11(%arg0: i32) -> (i32, i32, i32) {
    %c0_i32 = arith.constant 0 : i32
    %c0_i32_0 = arith.constant 0 : i32
    %c0_i32_1 = arith.constant 0 : i32
    return %arg0, %c0_i32, %c0_i32_0 : i32, i32, i32
  }
}

</mosaic_0001>

<llo_original>
// kernel: tpu_custom_call.1
$region0: #{tpu_custom_call.1}
  #allocation0 [shape = 'u32[]', space=smem, size = 0x4, offset = 0x4, fixed_abs, tag = 'smem constant byte address 0x4 - core index']
  #allocation1 [shape = 'u32[72,128]{1,0:T(1,128)}', space=vmem, size = 0x9000, scoped, tag = 'internal scratch']
  %s0 = inlined_call_operand.hbm [shape: f32[2,8,32], index: 0, kind: input, shape index: {}]
  %s1 = inlined_call_operand.hbm [shape: f32[2,8,32], index: 1, kind: input, shape index: {}]
  %s2 = inlined_call_operand.hbm [shape: f32[2,8,32], index: 2, kind: input, shape index: {}]
  %s3 = inlined_call_operand.hbm [shape: f32[2,8,32], index: 3, kind: input, shape index: {}]
  %s4 = inlined_call_operand.hbm [shape: f32[2,8,32], index: 4, kind: input, shape index: {}]
  %s5 = inlined_call_operand.hbm [shape: f32[2,8,32], index: 5, kind: input, shape index: {}]
  %s6 = inlined_call_operand.hbm [shape: f32[32,32], index: 6, kind: input, shape index: {}]
  %s7 = inlined_call_operand.hbm [shape: f32[32,32], index: 7, kind: input, shape index: {}]
  %s8 = inlined_call_operand.hbm [shape: f32[32,32], index: 8, kind: input, shape index: {}]
  %s9 = inlined_call_operand.hbm [shape: f32[32,32], index: 9, kind: input, shape index: {}]
  %s10 = inlined_call_operand.vmem [shape: f32[4,32], index: 10, kind: input, shape index: {}]
  %s11 = inlined_call_operand.hbm [shape: f32[2,8,32], index: 11, kind: output, shape index: {}]
  %s12 = sld [smem:[#allocation0]]
  $region117: #{tpu_custom_call.1} parent=0
    _
  %s14 = ssub.s32 1, %s12
  %s15 = scalar_select 0, %s14, %s12
  $region1: #{tpu_custom_call.1} parent=0
    #allocation2 [shape = 'u8[8192]{0}', space=vmem, size = 0x2000, scoped, tag = 'input window, operand 0']
    #allocation3 [shape = 's32[2]{0}', space=sflag, size = 0x8, scoped, tag = 'scoped memory for tpu_custom_call.1']
    #allocation4 [shape = 's32[2]{0}', space=sflag, size = 0x8, scoped, tag = 'scoped memory for tpu_custom_call.1']
    #allocation5 [shape = 'u8[8192]{0}', space=vmem, size = 0x2000, scoped, tag = 'input window, operand 1']
    #allocation6 [shape = 's32[2]{0}', space=sflag, size = 0x8, scoped, tag = 'scoped memory for tpu_custom_call.1']
    #allocation7 [shape = 'u8[8192]{0}', space=vmem, size = 0x2000, scoped, tag = 'input window, operand 2']
    #allocation8 [shape = 'u8[8192]{0}', space=vmem, size = 0x2000, scoped, tag = 'input window, operand 3']
    #allocation9 [shape = 's32[2]{0}', space=sflag, size = 0x8, scoped, tag = 'scoped memory for tpu_custom_call.1']
    #allocation10 [shape = 'u8[8192]{0}', space=vmem, size = 0x2000, scoped, tag = 'input window, operand 4']
    #allocation11 [shape = 'u8[8192]{0}', space=vmem, size = 0x2000, scoped, tag = 'input window, operand 5']
    #allocation12 [shape = 's32[2]{0}', space=sflag, size = 0x8, scoped, tag = 'scoped memory for tpu_custom_call.1']
    #allocation13 [shape = 'u8[16384]{0}', space=vmem, size = 0x4000, scoped, tag = 'input window, operand 6, single buffered']
    #allocation14 [shape = 'u8[16384]{0}', space=vmem, size = 0x4000, scoped, tag = 'input window, operand 7, single buffered']
    #allocation15 [shape = 's32[1]{0}', space=sflag, size = 0x4, scoped, tag = 'scoped memory for tpu_custom_call.1']
    #allocation16 [shape = 'u8[16384]{0}', space=vmem, size = 0x4000, scoped, tag = 'input window, operand 8, single buffered']
    #allocation17 [shape = 'u8[16384]{0}', space=vmem, size = 0x4000, scoped, tag = 'input window, operand 9, single buffered']
    #allocation18 [shape = 's32[1]{0}', space=sflag, size = 0x4, scoped, tag = 'scoped memory for tpu_custom_call.1']
    #allocation19 [shape = 'u8[8192]{0}', space=vmem, size = 0x2000, scoped, tag = 'output window, operand 0']
    %16 = vsyncpa [#allocation3], 0
    %s17 = scalar_lea.sflag [#allocation3], 1
    %18 = vsyncpa %s17, 0
    %19 = vsyncpa [#allocation6], 0
    %s20 = scalar_lea.sflag [#allocation6], 1
    %21 = vsyncpa %s20, 0
    %22 = vsyncpa [#allocation9], 0
    %s23 = scalar_lea.sflag [#allocation9], 1
    %24 = vsyncpa %s23, 0
    %25 = vsyncpa [#allocation12], 0
    %s26 = scalar_lea.sflag [#allocation12], 1
    %27 = vsyncpa %s26, 0
    %28 = vsyncpa [#allocation15], 0
    %29 = vsyncpa [#allocation18], 0
    %30 = vsyncpa [#allocation4], 0
    %s31 = scalar_lea.sflag [#allocation4], 1
    %32 = vsyncpa %s31, 0
    loop: start=0, step=1, limit=4
    $region2: #{tpu_custom_call.1} parent=1 // loop_pre_header
      _
    $region3: #{tpu_custom_call.1} parent=1 // loop_header
      %s34 = sphi 0, %s38
      %p35 = scmp.ge.s32.totalorder %s34, 4
      %s44 = sphi 0, %s46
      %s47 = sphi 0, %s44
      %s48 = sphi 0, %s47
      %s64 = sphi 0, %s48
      %s70 = sphi 0, %s72
      %s73 = sphi 0, %s70
      %s74 = sphi 0, %s73
      %s90 = sphi 0, %s74
      %s96 = sphi 0, %s98
      %s99 = sphi 0, %s96
      %s100 = sphi 0, %s99
      %s116 = sphi 0, %s100
      %s122 = sphi 0, %s124
      %s125 = sphi 0, %s122
      %s126 = sphi 0, %s125
      %s142 = sphi 0, %s126
      %s148 = sphi 0, %s150
      %s151 = sphi 0, %s148
      %s152 = sphi 0, %s151
      %s168 = sphi 0, %s152
      %s174 = sphi 0, %s176
      %s177 = sphi 0, %s174
      %s178 = sphi 0, %s177
      %s194 = sphi 0, %s178
      %s198 = sphi 0, %s198
      %s200 = sphi 0, %s198
      %s201 = sphi 0, %s200
      %s215 = sphi 0, %s201
      %s219 = sphi 0, %s219
      %s221 = sphi 0, %s219
      %s222 = sphi 0, %s221
      %s236 = sphi 0, %s222
      %s240 = sphi 0, %s240
      %s242 = sphi 0, %s240
      %s243 = sphi 0, %s242
      %s257 = sphi 0, %s243
      %s261 = sphi 0, %s261
      %s263 = sphi 0, %s261
      %s264 = sphi 0, %s263
      %s278 = sphi 0, %s264
      %s282 = sphi 0, %s282
      %s284 = sphi 0, %s282
      %s285 = sphi 0, %s284
      %s299 = sphi 0, %s285
      %s305 = sphi 0, %s307
      %s308 = sphi 0, %s305
      %s309 = sphi 0, %s308
      %s325 = sphi 0, %s309
    $region4: #{tpu_custom_call.1} parent=1 // loop_header_branch
      %37 = sbr.rel (%p35) target = $region8
    $region5: #{tpu_custom_call.1} parent=1 // loop_body
      %s39 = ssub.s32 %s34, 1
      %s40 = ssub.s32 %s34, 2
      %s41 = sadd.s32 %s34, 1
      %s42 = ssub.s32 %s34, %s41
      %p43 = scmp.eq.s32.totalorder %s42, 0
      %s45 = sadd.s32 %s44, 1
      %s46 = scalar_select %p43, %s44, %s45
      %p49 = pneg %p43
      %p50 = scmp.eq.s32.totalorder %s34, 1
      %p51 = por %p49, %p50
      %p52 = scmp.ne.s32.totalorder %s44, %s47
      %p53 = scmp.eq.s32.totalorder %s34, 0
      %p54 = por %p52, %p53
      %p55 = scmp.ne.s32.totalorder %s44, %s47
      %p56 = scmp.eq.s32.totalorder %s39, 1
      %p57 = por %p55, %p56
      %p58 = scmp.ne.s32.totalorder %s47, %s48
      %p59 = scmp.eq.s32.totalorder %s39, 0
      %p60 = por %p58, %p59
      %p61 = scmp.ne.s32.totalorder %s47, %s48
      %p62 = scmp.eq.s32.totalorder %s40, 1
      %p63 = por %p61, %p62
      %p65 = scmp.ne.s32.totalorder %s48, %s64
      %p66 = scmp.eq.s32.totalorder %s40, 0
      %p67 = por %p65, %p66
      %s68 = ssub.s32 %s34, %s41
      %p69 = scmp.eq.s32.totalorder %s68, 0
      %s71 = sadd.s32 %s70, 1
      %s72 = scalar_select %p69, %s70, %s71
      %p75 = pneg %p69
      %p76 = scmp.eq.s32.totalorder %s34, 1
      %p77 = por %p75, %p76
      %p78 = scmp.ne.s32.totalorder %s70, %s73
      %p79 = scmp.eq.s32.totalorder %s34, 0
      %p80 = por %p78, %p79
      %p81 = scmp.ne.s32.totalorder %s70, %s73
      %p82 = scmp.eq.s32.totalorder %s39, 1
      %p83 = por %p81, %p82
      %p84 = scmp.ne.s32.totalorder %s73, %s74
      %p85 = scmp.eq.s32.totalorder %s39, 0
      %p86 = por %p84, %p85
      %p87 = scmp.ne.s32.totalorder %s73, %s74
      %p88 = scmp.eq.s32.totalorder %s40, 1
      %p89 = por %p87, %p88
      %p91 = scmp.ne.s32.totalorder %s74, %s90
      %p92 = scmp.eq.s32.totalorder %s40, 0
      %p93 = por %p91, %p92
      %s94 = ssub.s32 %s34, %s41
      %p95 = scmp.eq.s32.totalorder %s94, 0
      %s97 = sadd.s32 %s96, 1
      %s98 = scalar_select %p95, %s96, %s97
      %p101 = pneg %p95
      %p102 = scmp.eq.s32.totalorder %s34, 1
      %p103 = por %p101, %p102
      %p104 = scmp.ne.s32.totalorder %s96, %s99
      %p105 = scmp.eq.s32.totalorder %s34, 0
      %p106 = por %p104, %p105
      %p107 = scmp.ne.s32.totalorder %s96, %s99
      %p108 = scmp.eq.s32.totalorder %s39, 1
      %p109 = por %p107, %p108
      %p110 = scmp.ne.s32.totalorder %s99, %s100
      %p111 = scmp.eq.s32.totalorder %s39, 0
      %p112 = por %p110, %p111
      %p113 = scmp.ne.s32.totalorder %s99, %s100
      %p114 = scmp.eq.s32.totalorder %s40, 1
      %p115 = por %p113, %p114
      %p117 = scmp.ne.s32.totalorder %s100, %s116
      %p118 = scmp.eq.s32.totalorder %s40, 0
      %p119 = por %p117, %p118
      %s120 = ssub.s32 %s34, %s41
      %p121 = scmp.eq.s32.totalorder %s120, 0
      %s123 = sadd.s32 %s122, 1
      %s124 = scalar_select %p121, %s122, %s123
      %p127 = pneg %p121
      %p128 = scmp.eq.s32.totalorder %s34, 1
      %p129 = por %p127, %p128
      %p130 = scmp.ne.s32.totalorder %s122, %s125
      %p131 = scmp.eq.s32.totalorder %s34, 0
      %p132 = por %p130, %p131
      %p133 = scmp.ne.s32.totalorder %s122, %s125
      %p134 = scmp.eq.s32.totalorder %s39, 1
      %p135 = por %p133, %p134
      %p136 = scmp.ne.s32.totalorder %s125, %s126
      %p137 = scmp.eq.s32.totalorder %s39, 0
      %p138 = por %p136, %p137
      %p139 = scmp.ne.s32.totalorder %s125, %s126
      %p140 = scmp.eq.s32.totalorder %s40, 1
      %p141 = por %p139, %p140
      %p143 = scmp.ne.s32.totalorder %s126, %s142
      %p144 = scmp.eq.s32.totalorder %s40, 0
      %p145 = por %p143, %p144
      %s146 = ssub.s32 %s34, %s41
      %p147 = scmp.eq.s32.totalorder %s146, 0
      %s149 = sadd.s32 %s148, 1
      %s150 = scalar_select %p147, %s148, %s149
      %p153 = pneg %p147
      %p154 = scmp.eq.s32.totalorder %s34, 1
      %p155 = por %p153, %p154
      %p156 = scmp.ne.s32.totalorder %s148, %s151
      %p157 = scmp.eq.s32.totalorder %s34, 0
      %p158 = por %p156, %p157
      %p159 = scmp.ne.s32.totalorder %s148, %s151
      %p160 = scmp.eq.s32.totalorder %s39, 1
      %p161 = por %p159, %p160
      %p162 = scmp.ne.s32.totalorder %s151, %s152
      %p163 = scmp.eq.s32.totalorder %s39, 0
      %p164 = por %p162, %p163
      %p165 = scmp.ne.s32.totalorder %s151, %s152
      %p166 = scmp.eq.s32.totalorder %s40, 1
      %p167 = por %p165, %p166
      %p169 = scmp.ne.s32.totalorder %s152, %s168
      %p170 = scmp.eq.s32.totalorder %s40, 0
      %p171 = por %p169, %p170
      %s172 = ssub.s32 %s34, %s41
      %p173 = scmp.eq.s32.totalorder %s172, 0
      %s175 = sadd.s32 %s174, 1
      %s176 = scalar_select %p173, %s174, %s175
      %p179 = pneg %p173
      %p180 = scmp.eq.s32.totalorder %s34, 1
      %p181 = por %p179, %p180
      %p182 = scmp.ne.s32.totalorder %s174, %s177
      %p183 = scmp.eq.s32.totalorder %s34, 0
      %p184 = por %p182, %p183
      %p185 = scmp.ne.s32.totalorder %s174, %s177
      %p186 = scmp.eq.s32.totalorder %s39, 1
      %p187 = por %p185, %p186
      %p188 = scmp.ne.s32.totalorder %s177, %s178
      %p189 = scmp.eq.s32.totalorder %s39, 0
      %p190 = por %p188, %p189
      %p191 = scmp.ne.s32.totalorder %s177, %s178
      %p192 = scmp.eq.s32.totalorder %s40, 1
      %p193 = por %p191, %p192
      %p195 = scmp.ne.s32.totalorder %s178, %s194
      %p196 = scmp.eq.s32.totalorder %s40, 0
      %p197 = por %p195, %p196
      %s199 = sadd.s32 %s198, 1
      %p202 = scmp.eq.s32.totalorder %s34, 1
      %p203 = scmp.ne.s32.totalorder %s198, %s200
      %p204 = scmp.eq.s32.totalorder %s34, 0
      %p205 = por %p203, %p204
      %p206 = scmp.ne.s32.totalorder %s198, %s200
      %p207 = scmp.eq.s32.totalorder %s39, 1
      %p208 = por %p206, %p207
      %p209 = scmp.ne.s32.totalorder %s200, %s201
      %p210 = scmp.eq.s32.totalorder %s39, 0
      %p211 = por %p209, %p210
      %p212 = scmp.ne.s32.totalorder %s200, %s201
      %p213 = scmp.eq.s32.totalorder %s40, 1
      %p214 = por %p212, %p213
      %p216 = scmp.ne.s32.totalorder %s201, %s215
      %p217 = scmp.eq.s32.totalorder %s40, 0
      %p218 = por %p216, %p217
      %s220 = sadd.s32 %s219, 1
      %p223 = scmp.eq.s32.totalorder %s34, 1
      %p224 = scmp.ne.s32.totalorder %s219, %s221
      %p225 = scmp.eq.s32.totalorder %s34, 0
      %p226 = por %p224, %p225
      %p227 = scmp.ne.s32.totalorder %s219, %s221
      %p228 = scmp.eq.s32.totalorder %s39, 1
      %p229 = por %p227, %p228
      %p230 = scmp.ne.s32.totalorder %s221, %s222
      %p231 = scmp.eq.s32.totalorder %s39, 0
      %p232 = por %p230, %p231
      %p233 = scmp.ne.s32.totalorder %s221, %s222
      %p234 = scmp.eq.s32.totalorder %s40, 1
      %p235 = por %p233, %p234
      %p237 = scmp.ne.s32.totalorder %s222, %s236
      %p238 = scmp.eq.s32.totalorder %s40, 0
      %p239 = por %p237, %p238
      %s241 = sadd.s32 %s240, 1
      %p244 = scmp.eq.s32.totalorder %s34, 1
      %p245 = scmp.ne.s32.totalorder %s240, %s242
      %p246 = scmp.eq.s32.totalorder %s34, 0
      %p247 = por %p245, %p246
      %p248 = scmp.ne.s32.totalorder %s240, %s242
      %p249 = scmp.eq.s32.totalorder %s39, 1
      %p250 = por %p248, %p249
      %p251 = scmp.ne.s32.totalorder %s242, %s243
      %p252 = scmp.eq.s32.totalorder %s39, 0
      %p253 = por %p251, %p252
      %p254 = scmp.ne.s32.totalorder %s242, %s243
      %p255 = scmp.eq.s32.totalorder %s40, 1
      %p256 = por %p254, %p255
      %p258 = scmp.ne.s32.totalorder %s243, %s257
      %p259 = scmp.eq.s32.totalorder %s40, 0
      %p260 = por %p258, %p259
      %s262 = sadd.s32 %s261, 1
      %p265 = scmp.eq.s32.totalorder %s34, 1
      %p266 = scmp.ne.s32.totalorder %s261, %s263
      %p267 = scmp.eq.s32.totalorder %s34, 0
      %p268 = por %p266, %p267
      %p269 = scmp.ne.s32.totalorder %s261, %s263
      %p270 = scmp.eq.s32.totalorder %s39, 1
      %p271 = por %p269, %p270
      %p272 = scmp.ne.s32.totalorder %s263, %s264
      %p273 = scmp.eq.s32.totalorder %s39, 0
      %p274 = por %p272, %p273
      %p275 = scmp.ne.s32.totalorder %s263, %s264
      %p276 = scmp.eq.s32.totalorder %s40, 1
      %p277 = por %p275, %p276
      %p279 = scmp.ne.s32.totalorder %s264, %s278
      %p280 = scmp.eq.s32.totalorder %s40, 0
      %p281 = por %p279, %p280
      %s283 = sadd.s32 %s282, 1
      %p286 = scmp.eq.s32.totalorder %s34, 1
      %p287 = scmp.ne.s32.totalorder %s282, %s284
      %p288 = scmp.eq.s32.totalorder %s34, 0
      %p289 = por %p287, %p288
      %p290 = scmp.ne.s32.totalorder %s282, %s284
      %p291 = scmp.eq.s32.totalorder %s39, 1
      %p292 = por %p290, %p291
      %p293 = scmp.ne.s32.totalorder %s284, %s285
      %p294 = scmp.eq.s32.totalorder %s39, 0
      %p295 = por %p293, %p294
      %p296 = scmp.ne.s32.totalorder %s284, %s285
      %p297 = scmp.eq.s32.totalorder %s40, 1
      %p298 = por %p296, %p297
      %p300 = scmp.ne.s32.totalorder %s285, %s299
      %p301 = scmp.eq.s32.totalorder %s40, 0
      %p302 = por %p300, %p301
      %s303 = ssub.s32 %s34, %s41
      %p304 = scmp.eq.s32.totalorder %s303, 0
      %s306 = sadd.s32 %s305, 1
      %s307 = scalar_select %p304, %s305, %s306
      %p310 = pneg %p304
      %p311 = scmp.eq.s32.totalorder %s34, 1
      %p312 = por %p310, %p311
      %p313 = scmp.ne.s32.totalorder %s305, %s308
      %p314 = scmp.eq.s32.totalorder %s34, 0
      %p315 = por %p313, %p314
      %p316 = scmp.ne.s32.totalorder %s305, %s308
      %p317 = scmp.eq.s32.totalorder %s39, 1
      %p318 = por %p316, %p317
      %p319 = scmp.ne.s32.totalorder %s308, %s309
      %p320 = scmp.eq.s32.totalorder %s39, 0
      %p321 = por %p319, %p320
      %p322 = scmp.ne.s32.totalorder %s308, %s309
      %p323 = scmp.eq.s32.totalorder %s40, 1
      %p324 = por %p322, %p323
      %p326 = scmp.ne.s32.totalorder %s309, %s325
      %p327 = scmp.eq.s32.totalorder %s40, 0
      %p328 = por %p326, %p327
      %p329 = scmp.le.s32.totalorder 1, %s34
      %p330 = scmp.lt.s32.totalorder %s34, 3
      %p331 = pnand %p329, %p330
      %p332 = pneg %p331
      // Predicated region
      $region9: #{tpu_custom_call.1} parent=5 // pred_check
        _
      $region10: #{tpu_custom_call.1} parent=5 // pred_check_branch
        %334 = sbr.rel (%p331) target = $region12
      $region11: #{tpu_custom_call.1} parent=5 // pred_region
        %s335 = ssub.s32 %s34, 1
        // Predicated region
        $region13: #{tpu_custom_call.1} parent=11 // pred_check
          %p336 = pneg %p211
        $region14: #{tpu_custom_call.1} parent=11 // pred_check_branch
          %338 = sbr.rel (%p336) target = $region16
        $region15: #{tpu_custom_call.1} parent=11 // pred_region
          %340 = vsyncadd [#allocation12], 0
          %s341 = sshll.u32 %s6, 4
          %s342 = int_to_ptr.hbm [resolvable:$true] %s341
          %s343 = sshll.u32 [#allocation13], 4
          %s344 = int_to_ptr.vmem [resolvable:$true] %s343
          %349 = dma.hbm_to_vmem [thread:$0]  %s342, 512, %s344, [#allocation12], 128, 128, 8
        $region16: #{tpu_custom_call.1} parent=11 // pred_fallthru
          _
        // Predicated region
        $region17: #{tpu_custom_call.1} parent=11 // pred_check
          %p350 = pneg %p232
        $region18: #{tpu_custom_call.1} parent=11 // pred_check_branch
          %352 = sbr.rel (%p350) target = $region20
        $region19: #{tpu_custom_call.1} parent=11 // pred_region
          %354 = vsyncadd [#allocation15], 0
          %s355 = sshll.u32 %s7, 4
          %s356 = int_to_ptr.hbm [resolvable:$true] %s355
          %s357 = sshll.u32 [#allocation14], 4
          %s358 = int_to_ptr.vmem [resolvable:$true] %s357
          %363 = dma.hbm_to_vmem [thread:$0]  %s356, 512, %s358, [#allocation15], 128, 128, 8
        $region20: #{tpu_custom_call.1} parent=11 // pred_fallthru
          _
        // Predicated region
        $region21: #{tpu_custom_call.1} parent=11 // pred_check
          %p364 = pneg %p253
        $region22: #{tpu_custom_call.1} parent=11 // pred_check_branch
          %366 = sbr.rel (%p364) target = $region24
        $region23: #{tpu_custom_call.1} parent=11 // pred_region
          %368 = vsyncadd [#allocation15], 0
          %s369 = sshll.u32 %s8, 4
          %s370 = int_to_ptr.hbm [resolvable:$true] %s369
          %s371 = sshll.u32 [#allocation16], 4
          %s372 = int_to_ptr.vmem [resolvable:$true] %s371
          %377 = dma.hbm_to_vmem [thread:$0]  %s370, 512, %s372, [#allocation15], 128, 128, 8
        $region24: #{tpu_custom_call.1} parent=11 // pred_fallthru
          _
        // Predicated region
        $region25: #{tpu_custom_call.1} parent=11 // pred_check
          %p378 = pneg %p274
        $region26: #{tpu_custom_call.1} parent=11 // pred_check_branch
          %380 = sbr.rel (%p378) target = $region28
        $region27: #{tpu_custom_call.1} parent=11 // pred_region
          %382 = vsyncadd [#allocation18], 0
          %s383 = sshll.u32 %s9, 4
          %s384 = int_to_ptr.hbm [resolvable:$true] %s383
          %s385 = sshll.u32 [#allocation17], 4
          %s386 = int_to_ptr.vmem [resolvable:$true] %s385
          %391 = dma.hbm_to_vmem [thread:$0]  %s384, 512, %s386, [#allocation18], 128, 128, 8
        $region28: #{tpu_custom_call.1} parent=11 // pred_fallthru
          _
        // Predicated region
        $region29: #{tpu_custom_call.1} parent=11 // pred_check
          %p392 = pneg %p295
        $region30: #{tpu_custom_call.1} parent=11 // pred_check_branch
          %394 = sbr.rel (%p392) target = $region32
        $region31: #{tpu_custom_call.1} parent=11 // pred_region
          _
        $region32: #{tpu_custom_call.1} parent=11 // pred_fallthru
          _
      $region12: #{tpu_custom_call.1} parent=5 // pred_fallthru
        _
      %p395 = scmp.lt.s32.totalorder %s34, 2
      // Predicated region
      $region33: #{tpu_custom_call.1} parent=5 // pred_check
        %p396 = pneg %p395
      $region34: #{tpu_custom_call.1} parent=5 // pred_check_branch
        %398 = sbr.rel (%p396) target = $region36
      $region35: #{tpu_custom_call.1} parent=5 // pred_region
        // Predicated region
        $region37: #{tpu_custom_call.1} parent=35 // pred_check
          %p399 = pneg %p54
        $region38: #{tpu_custom_call.1} parent=35 // pred_check_branch
          %401 = sbr.rel (%p399) target = $region40
        $region39: #{tpu_custom_call.1} parent=35 // pred_region
          %s402 = sand.u32 %s44, 1
          %s403 = scalar_lea.sflag [#allocation3], %s402
          %s404 = sand.u32 %s44, 1
          %s405 = smul.addr %s404, 8
          %s406 = scalar_lea.vmem [#allocation2], %s405
          %408 = vsyncadd %s403, 0
          %s409 = smul.addr %s34, 8
          %s410 = scalar_lea.hbm %s0, %s409
          %s412 = sshll.u32 %s410, 4
          %s413 = int_to_ptr.hbm [resolvable:$true] %s412
          %s414 = sshll.u32 %s406, 4
          %s415 = int_to_ptr.vmem [resolvable:$true] %s414
          %417 = dma.hbm_to_vmem [thread:$0]  %s413, 128, %s415, %s403
        $region40: #{tpu_custom_call.1} parent=35 // pred_fallthru
          _
        // Predicated region
        $region41: #{tpu_custom_call.1} parent=35 // pred_check
          %p418 = pneg %p80
        $region42: #{tpu_custom_call.1} parent=35 // pred_check_branch
          %420 = sbr.rel (%p418) target = $region44
        $region43: #{tpu_custom_call.1} parent=35 // pred_region
          %s421 = sand.u32 %s34, 1
          %s422 = scalar_lea.sflag [#allocation6], %s421
          %s423 = sand.u32 %s70, 1
          %s424 = smul.addr %s423, 8
          %s425 = scalar_lea.vmem [#allocation5], %s424
          %427 = vsyncadd %s422, 0
          %s428 = smul.addr %s34, 8
          %s429 = scalar_lea.hbm %s1, %s428
          %s431 = sshll.u32 %s429, 4
          %s432 = int_to_ptr.hbm [resolvable:$true] %s431
          %s433 = sshll.u32 %s425, 4
          %s434 = int_to_ptr.vmem [resolvable:$true] %s433
          %436 = dma.hbm_to_vmem [thread:$0]  %s432, 128, %s434, %s422
        $region44: #{tpu_custom_call.1} parent=35 // pred_fallthru
          _
        // Predicated region
        $region45: #{tpu_custom_call.1} parent=35 // pred_check
          %p437 = pneg %p106
        $region46: #{tpu_custom_call.1} parent=35 // pred_check_branch
          %439 = sbr.rel (%p437) target = $region48
        $region47: #{tpu_custom_call.1} parent=35 // pred_region
          %s440 = sand.u32 %s34, 1
          %s441 = scalar_lea.sflag [#allocation6], %s440
          %s442 = sand.u32 %s96, 1
          %s443 = smul.addr %s442, 8
          %s444 = scalar_lea.vmem [#allocation7], %s443
          %446 = vsyncadd %s441, 0
          %s447 = smul.addr %s34, 8
          %s448 = scalar_lea.hbm %s2, %s447
          %s450 = sshll.u32 %s448, 4
          %s451 = int_to_ptr.hbm [resolvable:$true] %s450
          %s452 = sshll.u32 %s444, 4
          %s453 = int_to_ptr.vmem [resolvable:$true] %s452
          %455 = dma.hbm_to_vmem [thread:$0]  %s451, 128, %s453, %s441
        $region48: #{tpu_custom_call.1} parent=35 // pred_fallthru
          _
        // Predicated region
        $region49: #{tpu_custom_call.1} parent=35 // pred_check
          %p456 = pneg %p132
        $region50: #{tpu_custom_call.1} parent=35 // pred_check_branch
          %458 = sbr.rel (%p456) target = $region52
        $region51: #{tpu_custom_call.1} parent=35 // pred_region
          %s459 = sand.u32 %s34, 1
          %s460 = scalar_lea.sflag [#allocation9], %s459
          %s461 = sand.u32 %s122, 1
          %s462 = smul.addr %s461, 8
          %s463 = scalar_lea.vmem [#allocation8], %s462
          %465 = vsyncadd %s460, 0
          %s466 = smul.addr %s34, 8
          %s467 = scalar_lea.hbm %s3, %s466
          %s469 = sshll.u32 %s467, 4
          %s470 = int_to_ptr.hbm [resolvable:$true] %s469
          %s471 = sshll.u32 %s463, 4
          %s472 = int_to_ptr.vmem [resolvable:$true] %s471
          %474 = dma.hbm_to_vmem [thread:$0]  %s470, 128, %s472, %s460
        $region52: #{tpu_custom_call.1} parent=35 // pred_fallthru
          _
        // Predicated region
        $region53: #{tpu_custom_call.1} parent=35 // pred_check
          %p475 = pneg %p158
        $region54: #{tpu_custom_call.1} parent=35 // pred_check_branch
          %477 = sbr.rel (%p475) target = $region56
        $region55: #{tpu_custom_call.1} parent=35 // pred_region
          %s478 = sand.u32 %s34, 1
          %s479 = scalar_lea.sflag [#allocation9], %s478
          %s480 = sand.u32 %s148, 1
          %s481 = smul.addr %s480, 8
          %s482 = scalar_lea.vmem [#allocation10], %s481
          %484 = vsyncadd %s479, 0
          %s485 = smul.addr %s34, 8
          %s486 = scalar_lea.hbm %s4, %s485
          %s488 = sshll.u32 %s486, 4
          %s489 = int_to_ptr.hbm [resolvable:$true] %s488
          %s490 = sshll.u32 %s482, 4
          %s491 = int_to_ptr.vmem [resolvable:$true] %s490
          %493 = dma.hbm_to_vmem [thread:$0]  %s489, 128, %s491, %s479
        $region56: #{tpu_custom_call.1} parent=35 // pred_fallthru
          _
        // Predicated region
        $region57: #{tpu_custom_call.1} parent=35 // pred_check
          %p494 = pneg %p184
        $region58: #{tpu_custom_call.1} parent=35 // pred_check_branch
          %496 = sbr.rel (%p494) target = $region60
        $region59: #{tpu_custom_call.1} parent=35 // pred_region
          %s497 = sand.u32 %s34, 1
          %s498 = scalar_lea.sflag [#allocation12], %s497
          %s499 = sand.u32 %s174, 1
          %s500 = smul.addr %s499, 8
          %s501 = scalar_lea.vmem [#allocation11], %s500
          %503 = vsyncadd %s498, 0
          %s504 = smul.addr %s34, 8
          %s505 = scalar_lea.hbm %s5, %s504
          %s507 = sshll.u32 %s505, 4
          %s508 = int_to_ptr.hbm [resolvable:$true] %s507
          %s509 = sshll.u32 %s501, 4
          %s510 = int_to_ptr.vmem [resolvable:$true] %s509
          %512 = dma.hbm_to_vmem [thread:$0]  %s508, 128, %s510, %s498
        $region60: #{tpu_custom_call.1} parent=35 // pred_fallthru
          _
      $region36: #{tpu_custom_call.1} parent=5 // pred_fallthru
        _
      %p513 = scmp.le.s32.totalorder 1, %s34
      %p514 = scmp.lt.s32.totalorder %s34, 3
      %p515 = pnand %p513, %p514
      %p516 = pneg %p515
      // Predicated region
      $region61: #{tpu_custom_call.1} parent=5 // pred_check
        _
      $region62: #{tpu_custom_call.1} parent=5 // pred_check_branch
        %518 = sbr.rel (%p515) target = $region64
      $region63: #{tpu_custom_call.1} parent=5 // pred_region
        %s519 = ssub.s32 %s34, 1
        %s520 = sand.u32 %s47, 1
        %s521 = scalar_lea.sflag [#allocation3], %s520
        %s522 = sand.u32 %s47, 1
        %s523 = smul.addr %s522, 8
        %s524 = scalar_lea.vmem [#allocation2], %s523
        // Predicated region
        $region65: #{tpu_custom_call.1} parent=63 // pred_check
          %p525 = pneg %p60
        $region66: #{tpu_custom_call.1} parent=63 // pred_check_branch
          %527 = sbr.rel (%p525) target = $region68
        $region67: #{tpu_custom_call.1} parent=63 // pred_region
          %529 = dma.done %s521, 128
        $region68: #{tpu_custom_call.1} parent=63 // pred_fallthru
          _
        %s530 = sand.u32 %s39, 1
        %s531 = scalar_lea.sflag [#allocation6], %s530
        %s532 = sand.u32 %s73, 1
        %s533 = smul.addr %s532, 8
        %s534 = scalar_lea.vmem [#allocation5], %s533
        // Predicated region
        $region69: #{tpu_custom_call.1} parent=63 // pred_check
          %p535 = pneg %p86
        $region70: #{tpu_custom_call.1} parent=63 // pred_check_branch
          %537 = sbr.rel (%p535) target = $region72
        $region71: #{tpu_custom_call.1} parent=63 // pred_region
          %539 = dma.done %s531, 128
        $region72: #{tpu_custom_call.1} parent=63 // pred_fallthru
          _
        %s540 = sand.u32 %s39, 1
        %s541 = scalar_lea.sflag [#allocation6], %s540
        %s542 = sand.u32 %s99, 1
        %s543 = smul.addr %s542, 8
        %s544 = scalar_lea.vmem [#allocation7], %s543
        // Predicated region
        $region73: #{tpu_custom_call.1} parent=63 // pred_check
          %p545 = pneg %p112
        $region74: #{tpu_custom_call.1} parent=63 // pred_check_branch
          %547 = sbr.rel (%p545) target = $region76
        $region75: #{tpu_custom_call.1} parent=63 // pred_region
          %549 = dma.done %s541, 128
        $region76: #{tpu_custom_call.1} parent=63 // pred_fallthru
          _
        %s550 = sand.u32 %s39, 1
        %s551 = scalar_lea.sflag [#allocation9], %s550
        %s552 = sand.u32 %s125, 1
        %s553 = smul.addr %s552, 8
        %s554 = scalar_lea.vmem [#allocation8], %s553
        // Predicated region
        $region77: #{tpu_custom_call.1} parent=63 // pred_check
          %p555 = pneg %p138
        $region78: #{tpu_custom_call.1} parent=63 // pred_check_branch
          %557 = sbr.rel (%p555) target = $region80
        $region79: #{tpu_custom_call.1} parent=63 // pred_region
          %559 = dma.done %s551, 128
        $region80: #{tpu_custom_call.1} parent=63 // pred_fallthru
          _
        %s560 = sand.u32 %s39, 1
        %s561 = scalar_lea.sflag [#allocation9], %s560
        %s562 = sand.u32 %s151, 1
        %s563 = smul.addr %s562, 8
        %s564 = scalar_lea.vmem [#allocation10], %s563
        // Predicated region
        $region81: #{tpu_custom_call.1} parent=63 // pred_check
          %p565 = pneg %p164
        $region82: #{tpu_custom_call.1} parent=63 // pred_check_branch
          %567 = sbr.rel (%p565) target = $region84
        $region83: #{tpu_custom_call.1} parent=63 // pred_region
          %569 = dma.done %s561, 128
        $region84: #{tpu_custom_call.1} parent=63 // pred_fallthru
          _
        %s570 = sand.u32 %s39, 1
        %s571 = scalar_lea.sflag [#allocation12], %s570
        %s572 = sand.u32 %s177, 1
        %s573 = smul.addr %s572, 8
        %s574 = scalar_lea.vmem [#allocation11], %s573
        // Predicated region
        $region85: #{tpu_custom_call.1} parent=63 // pred_check
          %p575 = pneg %p190
        $region86: #{tpu_custom_call.1} parent=63 // pred_check_branch
          %577 = sbr.rel (%p575) target = $region88
        $region87: #{tpu_custom_call.1} parent=63 // pred_region
          %579 = dma.done %s571, 128
        $region88: #{tpu_custom_call.1} parent=63 // pred_fallthru
          _
        // Predicated region
        $region89: #{tpu_custom_call.1} parent=63 // pred_check
          %p580 = pneg %p211
        $region90: #{tpu_custom_call.1} parent=63 // pred_check_branch
          %582 = sbr.rel (%p580) target = $region92
        $region91: #{tpu_custom_call.1} parent=63 // pred_region
          %584 = dma.done [#allocation12], 512
        $region92: #{tpu_custom_call.1} parent=63 // pred_fallthru
          _
        // Predicated region
        $region93: #{tpu_custom_call.1} parent=63 // pred_check
          %p585 = pneg %p232
        $region94: #{tpu_custom_call.1} parent=63 // pred_check_branch
          %587 = sbr.rel (%p585) target = $region96
        $region95: #{tpu_custom_call.1} parent=63 // pred_region
          %589 = dma.done [#allocation15], 512
        $region96: #{tpu_custom_call.1} parent=63 // pred_fallthru
          _
        // Predicated region
        $region97: #{tpu_custom_call.1} parent=63 // pred_check
          %p590 = pneg %p253
        $region98: #{tpu_custom_call.1} parent=63 // pred_check_branch
          %592 = sbr.rel (%p590) target = $region100
        $region99: #{tpu_custom_call.1} parent=63 // pred_region
          %594 = dma.done [#allocation15], 512
        $region100: #{tpu_custom_call.1} parent=63 // pred_fallthru
          _
        // Predicated region
        $region101: #{tpu_custom_call.1} parent=63 // pred_check
          %p595 = pneg %p274
        $region102: #{tpu_custom_call.1} parent=63 // pred_check_branch
          %597 = sbr.rel (%p595) target = $region104
        $region103: #{tpu_custom_call.1} parent=63 // pred_region
          %599 = dma.done [#allocation18], 512
        $region104: #{tpu_custom_call.1} parent=63 // pred_fallthru
          _
        %s600 = sand.u32 %s47, 1
        %s601 = scalar_lea.sflag [#allocation3], %s600
        %s602 = sand.u32 %s47, 1
        %s603 = smul.addr %s602, 8
        %s604 = scalar_lea.vmem [#allocation2], %s603
        %p605 = pneg %p60
        %p606 = pneg %p57
        %s607 = sand.u32 %s39, 1
        %s608 = scalar_lea.sflag [#allocation6], %s607
        %s609 = sand.u32 %s73, 1
        %s610 = smul.addr %s609, 8
        %s611 = scalar_lea.vmem [#allocation5], %s610
        %p612 = pneg %p86
        %p613 = pneg %p83
        %s614 = sand.u32 %s39, 1
        %s615 = scalar_lea.sflag [#allocation6], %s614
        %s616 = sand.u32 %s99, 1
        %s617 = smul.addr %s616, 8
        %s618 = scalar_lea.vmem [#allocation7], %s617
        %p619 = pneg %p112
        %p620 = pneg %p109
        %s621 = sand.u32 %s39, 1
        %s622 = scalar_lea.sflag [#allocation9], %s621
        %s623 = sand.u32 %s125, 1
        %s624 = smul.addr %s623, 8
        %s625 = scalar_lea.vmem [#allocation8], %s624
        %p626 = pneg %p138
        %p627 = pneg %p135
        %s628 = sand.u32 %s39, 1
        %s629 = scalar_lea.sflag [#allocation9], %s628
        %s630 = sand.u32 %s151, 1
        %s631 = smul.addr %s630, 8
        %s632 = scalar_lea.vmem [#allocation10], %s631
        %p633 = pneg %p164
        %p634 = pneg %p161
        %s635 = sand.u32 %s39, 1
        %s636 = scalar_lea.sflag [#allocation12], %s635
        %s637 = sand.u32 %s177, 1
        %s638 = smul.addr %s637, 8
        %s639 = scalar_lea.vmem [#allocation11], %s638
        %p640 = pneg %p190
        %p641 = pneg %p187
        %p642 = pneg %p211
        %p643 = pneg %p208
        %p644 = pneg %p232
        %p645 = pneg %p229
        %p646 = pneg %p253
        %p647 = pneg %p250
        %p648 = pneg %p274
        %p649 = pneg %p271
        %p650 = pneg %p295
        %p651 = pneg %p292
        %p652 = pneg %p321
        %p653 = pneg %p318
        %s654 = sand.u32 %s308, 1
        %s655 = scalar_lea.sflag [#allocation4], %s654
        %s656 = sand.u32 %s308, 1
        %s657 = smul.addr %s656, 8
        %s658 = scalar_lea.vmem [#allocation19], %s657
        %v659 = vld [vmem:[%s10] sm:$0x1]
        %v660 = vld [vmem:[%s10 + $0x1] sm:$0x1]
        %v661 = vld [vmem:[%s10 + $0x2] sm:$0x1]
        %v662 = vld [vmem:[%s10 + $0x3] sm:$0x1]
        %v663 = vld [vmem:[%s524] sm:$0xff]
        %v664 = vld [vmem:[#allocation13] sm:$0xff]
        %v665 = vld [vmem:[#allocation13 + $0x8] sm:$0xff]
        %v666 = vld [vmem:[#allocation13 + $0x10] sm:$0xff]
        %v667 = vld [vmem:[#allocation13 + $0x18] sm:$0xff]
        %v668 = vperm.slane %v659, 0
        %vm669 = vcmask 261120
        %v671 = vsel %vm669, %v663, 0
        %673 = vmatpush.msra.mxu0 0.0
        %674 = vmatpush.msra.mxu0 0.0
        %675 = vmatpush.msra.mxu0 0.0
        %676 = vmatpush.msra.mxu0 0.0
        %677 = vmatpush.msra.mxu0 0.0
        %678 = vmatpush.msra.mxu0 0.0
        %679 = vmatpush.msra.mxu0 0.0
        %680 = vmatpush.msra.mxu0 0.0
        %681 = vmatpush.msra.mxu0 0.0
        %682 = vmatpush.msra.mxu0 0.0
        %683 = vmatpush.msra.mxu0 0.0
        %684 = vmatpush.msra.mxu0 0.0
        %685 = vmatpush.msra.mxu0 %v667
        %686 = vmatpush.msra.mxu0 %v666
        %687 = vmatpush.msra.mxu0 %v665
        %688 = vmatpush.msra.mxu0 %v664
        %689 = vmatmul.f32.gmra.mxu0 %v671
        %v690 = vpop.f32.mrf.mxu0
        %v691 = vadd.f32 %v668, %v690
        %692 = vdwg.mxu0
        %v693 = vld [vmem:[%s554] sm:$0xff]
        %v695 = vsel %vm669, %v693, 0
        %697 = vmatpush.msra.mxu0 0.0
        %698 = vmatpush.msra.mxu0 0.0
        %699 = vmatpush.msra.mxu0 0.0
        %700 = vmatpush.msra.mxu0 0.0
        %701 = vmatpush.msra.mxu0 0.0
        %702 = vmatpush.msra.mxu0 0.0
        %703 = vmatpush.msra.mxu0 0.0
        %704 = vmatpush.msra.mxu0 0.0
        %705 = vmatpush.msra.mxu0 0.0
        %706 = vmatpush.msra.mxu0 0.0
        %707 = vmatpush.msra.mxu0 0.0
        %708 = vmatpush.msra.mxu0 0.0
        %709 = vmatpush.msra.mxu0 %v667
        %710 = vmatpush.msra.mxu0 %v666
        %711 = vmatpush.msra.mxu0 %v665
        %712 = vmatpush.msra.mxu0 %v664
        %713 = vmatmul.f32.gmra.mxu0 %v695
        %v714 = vpop.f32.mrf.mxu0
        %v715 = vadd.f32 %v668, %v714
        %716 = vdwg.mxu0
        %v717 = vld [vmem:[%s534] sm:$0xff]
        %v718 = vld [vmem:[#allocation14] sm:$0xff]
        %v719 = vld [vmem:[#allocation14 + $0x8] sm:$0xff]
        %v720 = vld [vmem:[#allocation14 + $0x10] sm:$0xff]
        %v721 = vld [vmem:[#allocation14 + $0x18] sm:$0xff]
        %v722 = vperm.slane %v660, 0
        %v724 = vsel %vm669, %v717, 0
        %726 = vmatpush.msra.mxu0 0.0
        %727 = vmatpush.msra.mxu0 0.0
        %728 = vmatpush.msra.mxu0 0.0
        %729 = vmatpush.msra.mxu0 0.0
        %730 = vmatpush.msra.mxu0 0.0
        %731 = vmatpush.msra.mxu0 0.0
        %732 = vmatpush.msra.mxu0 0.0
        %733 = vmatpush.msra.mxu0 0.0
        %734 = vmatpush.msra.mxu0 0.0
        %735 = vmatpush.msra.mxu0 0.0
        %736 = vmatpush.msra.mxu0 0.0
        %737 = vmatpush.msra.mxu0 0.0
        %738 = vmatpush.msra.mxu0 %v721
        %739 = vmatpush.msra.mxu0 %v720
        %740 = vmatpush.msra.mxu0 %v719
        %741 = vmatpush.msra.mxu0 %v718
        %742 = vmatmul.f32.gmra.mxu0 %v724
        %v743 = vpop.f32.mrf.mxu0
        %v744 = vadd.f32 %v722, %v743
        %745 = vdwg.mxu0
        %v746 = vld [vmem:[%s564] sm:$0xff]
        %v748 = vsel %vm669, %v746, 0
        %750 = vmatpush.msra.mxu0 0.0
        %751 = vmatpush.msra.mxu0 0.0
        %752 = vmatpush.msra.mxu0 0.0
        %753 = vmatpush.msra.mxu0 0.0
        %754 = vmatpush.msra.mxu0 0.0
        %755 = vmatpush.msra.mxu0 0.0
        %756 = vmatpush.msra.mxu0 0.0
        %757 = vmatpush.msra.mxu0 0.0
        %758 = vmatpush.msra.mxu0 0.0
        %759 = vmatpush.msra.mxu0 0.0
        %760 = vmatpush.msra.mxu0 0.0
        %761 = vmatpush.msra.mxu0 0.0
        %762 = vmatpush.msra.mxu0 %v721
        %763 = vmatpush.msra.mxu0 %v720
        %764 = vmatpush.msra.mxu0 %v719
        %765 = vmatpush.msra.mxu0 %v718
        %766 = vmatmul.f32.gmra.mxu0 %v748
        %v767 = vpop.f32.mrf.mxu0
        %v768 = vadd.f32 %v722, %v767
        %769 = vdwg.mxu0
        %v770 = vld [vmem:[%s544] sm:$0xff]
        %v771 = vld [vmem:[#allocation16] sm:$0xff]
        %v772 = vld [vmem:[#allocation16 + $0x8] sm:$0xff]
        %v773 = vld [vmem:[#allocation16 + $0x10] sm:$0xff]
        %v774 = vld [vmem:[#allocation16 + $0x18] sm:$0xff]
        %v775 = vperm.slane %v661, 0
        %v777 = vsel %vm669, %v770, 0
        %779 = vmatpush.msra.mxu0 0.0
        %780 = vmatpush.msra.mxu0 0.0
        %781 = vmatpush.msra.mxu0 0.0
        %782 = vmatpush.msra.mxu0 0.0
        %783 = vmatpush.msra.mxu0 0.0
        %784 = vmatpush.msra.mxu0 0.0
        %785 = vmatpush.msra.mxu0 0.0
        %786 = vmatpush.msra.mxu0 0.0
        %787 = vmatpush.msra.mxu0 0.0
        %788 = vmatpush.msra.mxu0 0.0
        %789 = vmatpush.msra.mxu0 0.0
        %790 = vmatpush.msra.mxu0 0.0
        %791 = vmatpush.msra.mxu0 %v774
        %792 = vmatpush.msra.mxu0 %v773
        %793 = vmatpush.msra.mxu0 %v772
        %794 = vmatpush.msra.mxu0 %v771
        %795 = vmatmul.f32.gmra.mxu0 %v777
        %v796 = vpop.f32.mrf.mxu0
        %v797 = vadd.f32 %v775, %v796
        %798 = vdwg.mxu0
        %v799 = vld [vmem:[%s574] sm:$0xff]
        %v801 = vsel %vm669, %v799, 0
        %803 = vmatpush.msra.mxu0 0.0
        %804 = vmatpush.msra.mxu0 0.0
        %805 = vmatpush.msra.mxu0 0.0
        %806 = vmatpush.msra.mxu0 0.0
        %807 = vmatpush.msra.mxu0 0.0
        %808 = vmatpush.msra.mxu0 0.0
        %809 = vmatpush.msra.mxu0 0.0
        %810 = vmatpush.msra.mxu0 0.0
        %811 = vmatpush.msra.mxu0 0.0
        %812 = vmatpush.msra.mxu0 0.0
        %813 = vmatpush.msra.mxu0 0.0
        %814 = vmatpush.msra.mxu0 0.0
        %815 = vmatpush.msra.mxu0 %v774
        %816 = vmatpush.msra.mxu0 %v773
        %817 = vmatpush.msra.mxu0 %v772
        %818 = vmatpush.msra.mxu0 %v771
        %819 = vmatmul.f32.gmra.mxu0 %v801
        %v820 = vpop.f32.mrf.mxu0
        %v821 = vadd.f32 %v775, %v820
        %822 = vdwg.mxu0
        %v823 = vmul.f32 %v691, 0.35355338
        %v824 = vmul.f32 %v715, 0.35355338
        %vm825 = vcmask 64512
        %v827 = vsel %vm825, %v823, 0
        %v830 = vsel %vm825, %v768, 0
        %832 = vmatpush.xpose.msra.mxu0 0.0
        %833 = vmatpush.xpose.msra.mxu0 0.0
        %834 = vmatpush.xpose.msra.mxu0 0.0
        %835 = vmatpush.xpose.msra.mxu0 0.0
        %836 = vmatpush.xpose.msra.mxu0 0.0
        %837 = vmatpush.xpose.msra.mxu0 0.0
        %838 = vmatpush.xpose.msra.mxu0 0.0
        %839 = vmatpush.xpose.msra.mxu0 0.0
        %840 = vmatpush.xpose.msra.mxu0 0.0
        %841 = vmatpush.xpose.msra.mxu0 0.0
        %842 = vmatpush.xpose.msra.mxu0 0.0
        %843 = vmatpush.xpose.msra.mxu0 0.0
        %844 = vmatpush.xpose.msra.mxu0 0.0
        %845 = vmatpush.xpose.msra.mxu0 0.0
        %846 = vmatpush.xpose.msra.mxu0 0.0
        %847 = vmatpush.xpose.msra.mxu0 %v830
        %848 = vmatmul.f32.gmra.mxu0 %v827
        %v849 = vpop.f32.mrf.mxu0
        %v850 = vadd.f32 0.0, %v849
        %851 = vdwg.mxu0
        %v853 = vsel %vm825, %v824, 0
        %v856 = vsel %vm825, %v744, 0
        %858 = vmatpush.xpose.msra.mxu0 0.0
        %859 = vmatpush.xpose.msra.mxu0 0.0
        %860 = vmatpush.xpose.msra.mxu0 0.0
        %861 = vmatpush.xpose.msra.mxu0 0.0
        %862 = vmatpush.xpose.msra.mxu0 0.0
        %863 = vmatpush.xpose.msra.mxu0 0.0
        %864 = vmatpush.xpose.msra.mxu0 0.0
        %865 = vmatpush.xpose.msra.mxu0 0.0
        %866 = vmatpush.xpose.msra.mxu0 0.0
        %867 = vmatpush.xpose.msra.mxu0 0.0
        %868 = vmatpush.xpose.msra.mxu0 0.0
        %869 = vmatpush.xpose.msra.mxu0 0.0
        %870 = vmatpush.xpose.msra.mxu0 0.0
        %871 = vmatpush.xpose.msra.mxu0 0.0
        %872 = vmatpush.xpose.msra.mxu0 0.0
        %873 = vmatpush.xpose.msra.mxu0 %v856
        %874 = vmatmul.f32.gmra.mxu0 %v853
        %v875 = vpop.f32.mrf.mxu0
        %v876 = vadd.f32 0.0, %v875
        %877 = vdwg.mxu0
        %v878 = vsel %vm825, %v850, -inf
        %879 = vmax.xlane.f32.xlu0 %v878
        %v880 = vpop.xlane.xlu0 %879
        %v881 = vsub.f32 %v850, %v880
        %v882 = vmul.f32 %v881, 1.442695
        %v883 = vpow.pop %v882
        %v884 = vsel %vm825, %v883, 0.0
        %885 = vadd.xlane.f32.xlu0 %v884
        %v886 = vpop.xlane.xlu0 %885
        %v887 = vrcp.pop %v886
        %v888 = vmul.f32 %v883, %v887
        %v889 = vsel %vm825, %v876, -inf
        %890 = vmax.xlane.f32.xlu0 %v889
        %v891 = vpop.xlane.xlu0 %890
        %v892 = vsub.f32 %v876, %v891
        %v893 = vmul.f32 %v892, 1.442695
        %v894 = vpow.pop %v893
        %v895 = vsel %vm825, %v894, 0.0
        %896 = vadd.xlane.f32.xlu0 %v895
        %v897 = vpop.xlane.xlu0 %896
        %v898 = vrcp.pop %v897
        %v899 = vmul.f32 %v894, %v898
        %v901 = vsel %vm825, %v899, 0
        %903 = vmatpush.msra.mxu0 0.0
        %904 = vmatpush.msra.mxu0 0.0
        %905 = vmatpush.msra.mxu0 0.0
        %906 = vmatpush.msra.mxu0 0.0
        %907 = vmatpush.msra.mxu0 0.0
        %908 = vmatpush.msra.mxu0 0.0
        %909 = vmatpush.msra.mxu0 0.0
        %910 = vmatpush.msra.mxu0 0.0
        %911 = vmatpush.msra.mxu0 0.0
        %912 = vmatpush.msra.mxu0 0.0
        %913 = vmatpush.msra.mxu0 0.0
        %914 = vmatpush.msra.mxu0 0.0
        %915 = vmatpush.msra.mxu0 0.0
        %916 = vmatpush.msra.mxu0 0.0
        %917 = vmatpush.msra.mxu0 0.0
        %918 = vmatpush.msra.mxu0 %v797
        %919 = vmatmul.f32.gmra.mxu0 %v901
        %v920 = vpop.f32.mrf.mxu0
        %v921 = vadd.f32 0.0, %v920
        %922 = vdwg.mxu0
        %v924 = vsel %vm825, %v888, 0
        %926 = vmatpush.msra.mxu0 0.0
        %927 = vmatpush.msra.mxu0 0.0
        %928 = vmatpush.msra.mxu0 0.0
        %929 = vmatpush.msra.mxu0 0.0
        %930 = vmatpush.msra.mxu0 0.0
        %931 = vmatpush.msra.mxu0 0.0
        %932 = vmatpush.msra.mxu0 0.0
        %933 = vmatpush.msra.mxu0 0.0
        %934 = vmatpush.msra.mxu0 0.0
        %935 = vmatpush.msra.mxu0 0.0
        %936 = vmatpush.msra.mxu0 0.0
        %937 = vmatpush.msra.mxu0 0.0
        %938 = vmatpush.msra.mxu0 0.0
        %939 = vmatpush.msra.mxu0 0.0
        %940 = vmatpush.msra.mxu0 0.0
        %941 = vmatpush.msra.mxu0 %v821
        %942 = vmatmul.f32.gmra.mxu0 %v924
        %v943 = vpop.f32.mrf.mxu0
        %v944 = vadd.f32 %v921, %v943
        %945 = vdwg.mxu0
        %946 = vrot.lane.b32.xlu0 %v823, 120
        %v947 = vpop.permute.xlu0 %946
        %948 = vrot.lane.b32.xlu0 %v768, 120
        %v949 = vpop.permute.xlu0 %948
        %v950 = vsel %vm825, %v947, 0
        %v952 = vsel %vm825, %v949, 0
        %954 = vmatpush.xpose.msra.mxu0 0.0
        %955 = vmatpush.xpose.msra.mxu0 0.0
        %956 = vmatpush.xpose.msra.mxu0 0.0
        %957 = vmatpush.xpose.msra.mxu0 0.0
        %958 = vmatpush.xpose.msra.mxu0 0.0
        %959 = vmatpush.xpose.msra.mxu0 0.0
        %960 = vmatpush.xpose.msra.mxu0 0.0
        %961 = vmatpush.xpose.msra.mxu0 0.0
        %962 = vmatpush.xpose.msra.mxu0 0.0
        %963 = vmatpush.xpose.msra.mxu0 0.0
        %964 = vmatpush.xpose.msra.mxu0 0.0
        %965 = vmatpush.xpose.msra.mxu0 0.0
        %966 = vmatpush.xpose.msra.mxu0 0.0
        %967 = vmatpush.xpose.msra.mxu0 0.0
        %968 = vmatpush.xpose.msra.mxu0 0.0
        %969 = vmatpush.xpose.msra.mxu0 %v952
        %970 = vmatmul.f32.gmra.mxu0 %v950
        %v971 = vpop.f32.mrf.mxu0
        %v972 = vadd.f32 0.0, %v971
        %973 = vdwg.mxu0
        %974 = vrot.lane.b32.xlu0 %v824, 120
        %v975 = vpop.permute.xlu0 %974
        %976 = vrot.lane.b32.xlu0 %v744, 120
        %v977 = vpop.permute.xlu0 %976
        %v978 = vsel %vm825, %v975, 0
        %v980 = vsel %vm825, %v977, 0
        %982 = vmatpush.xpose.msra.mxu0 0.0
        %983 = vmatpush.xpose.msra.mxu0 0.0
        %984 = vmatpush.xpose.msra.mxu0 0.0
        %985 = vmatpush.xpose.msra.mxu0 0.0
        %986 = vmatpush.xpose.msra.mxu0 0.0
        %987 = vmatpush.xpose.msra.mxu0 0.0
        %988 = vmatpush.xpose.msra.mxu0 0.0
        %989 = vmatpush.xpose.msra.mxu0 0.0
        %990 = vmatpush.xpose.msra.mxu0 0.0
        %991 = vmatpush.xpose.msra.mxu0 0.0
        %992 = vmatpush.xpose.msra.mxu0 0.0
        %993 = vmatpush.xpose.msra.mxu0 0.0
        %994 = vmatpush.xpose.msra.mxu0 0.0
        %995 = vmatpush.xpose.msra.mxu0 0.0
        %996 = vmatpush.xpose.msra.mxu0 0.0
        %997 = vmatpush.xpose.msra.mxu0 %v980
        %998 = vmatmul.f32.gmra.mxu0 %v978
        %v999 = vpop.f32.mrf.mxu0
        %v1000 = vadd.f32 0.0, %v999
        %1001 = vdwg.mxu0
        %v1002 = vsel %vm825, %v972, -inf
        %1003 = vmax.xlane.f32.xlu0 %v1002
        %v1004 = vpop.xlane.xlu0 %1003
        %v1005 = vsub.f32 %v972, %v1004
        %v1006 = vmul.f32 %v1005, 1.442695
        %v1007 = vpow.pop %v1006
        %v1008 = vsel %vm825, %v1007, 0.0
        %1009 = vadd.xlane.f32.xlu0 %v1008
        %v1010 = vpop.xlane.xlu0 %1009
        %v1011 = vrcp.pop %v1010
        %v1012 = vmul.f32 %v1007, %v1011
        %v1013 = vsel %vm825, %v1000, -inf
        %1014 = vmax.xlane.f32.xlu0 %v1013
        %v1015 = vpop.xlane.xlu0 %1014
        %v1016 = vsub.f32 %v1000, %v1015
        %v1017 = vmul.f32 %v1016, 1.442695
        %v1018 = vpow.pop %v1017
        %v1019 = vsel %vm825, %v1018, 0.0
        %1020 = vadd.xlane.f32.xlu0 %v1019
        %v1021 = vpop.xlane.xlu0 %1020
        %v1022 = vrcp.pop %v1021
        %v1023 = vmul.f32 %v1018, %v1022
        %1025 = vrot.lane.b32.xlu0 %v797, 120
        %v1026 = vpop.permute.xlu0 %1025
        %v1029 = vsel %vm825, %v1023, 0
        %1031 = vmatpush.msra.mxu0 0.0
        %1032 = vmatpush.msra.mxu0 0.0
        %1033 = vmatpush.msra.mxu0 0.0
        %1034 = vmatpush.msra.mxu0 0.0
        %1035 = vmatpush.msra.mxu0 0.0
        %1036 = vmatpush.msra.mxu0 0.0
        %1037 = vmatpush.msra.mxu0 0.0
        %1038 = vmatpush.msra.mxu0 0.0
        %1039 = vmatpush.msra.mxu0 0.0
        %1040 = vmatpush.msra.mxu0 0.0
        %1041 = vmatpush.msra.mxu0 0.0
        %1042 = vmatpush.msra.mxu0 0.0
        %1043 = vmatpush.msra.mxu0 0.0
        %1044 = vmatpush.msra.mxu0 0.0
        %1045 = vmatpush.msra.mxu0 0.0
        %1046 = vmatpush.msra.mxu0 %v1026
        %1047 = vmatmul.f32.gmra.mxu0 %v1029
        %v1048 = vpop.f32.mrf.mxu0
        %v1049 = vadd.f32 0.0, %v1048
        %1050 = vdwg.mxu0
        %1052 = vrot.lane.b32.xlu0 %v821, 120
        %v1053 = vpop.permute.xlu0 %1052
        %v1056 = vsel %vm825, %v1012, 0
        %1058 = vmatpush.msra.mxu0 0.0
        %1059 = vmatpush.msra.mxu0 0.0
        %1060 = vmatpush.msra.mxu0 0.0
        %1061 = vmatpush.msra.mxu0 0.0
        %1062 = vmatpush.msra.mxu0 0.0
        %1063 = vmatpush.msra.mxu0 0.0
        %1064 = vmatpush.msra.mxu0 0.0
        %1065 = vmatpush.msra.mxu0 0.0
        %1066 = vmatpush.msra.mxu0 0.0
        %1067 = vmatpush.msra.mxu0 0.0
        %1068 = vmatpush.msra.mxu0 0.0
        %1069 = vmatpush.msra.mxu0 0.0
        %1070 = vmatpush.msra.mxu0 0.0
        %1071 = vmatpush.msra.mxu0 0.0
        %1072 = vmatpush.msra.mxu0 0.0
        %1073 = vmatpush.msra.mxu0 %v1053
        %1074 = vmatmul.f32.gmra.mxu0 %v1056
        %v1075 = vpop.f32.mrf.mxu0
        %v1076 = vadd.f32 %v1049, %v1075
        %1077 = vdwg.mxu0
        %1078 = vrot.lane.b32.xlu0 %v823, 112
        %v1079 = vpop.permute.xlu0 %1078
        %1080 = vrot.lane.b32.xlu0 %v768, 112
        %v1081 = vpop.permute.xlu0 %1080
        %v1082 = vsel %vm825, %v1079, 0
        %v1084 = vsel %vm825, %v1081, 0
        %1086 = vmatpush.xpose.msra.mxu0 0.0
        %1087 = vmatpush.xpose.msra.mxu0 0.0
        %1088 = vmatpush.xpose.msra.mxu0 0.0
        %1089 = vmatpush.xpose.msra.mxu0 0.0
        %1090 = vmatpush.xpose.msra.mxu0 0.0
        %1091 = vmatpush.xpose.msra.mxu0 0.0
        %1092 = vmatpush.xpose.msra.mxu0 0.0
        %1093 = vmatpush.xpose.msra.mxu0 0.0
        %1094 = vmatpush.xpose.msra.mxu0 0.0
        %1095 = vmatpush.xpose.msra.mxu0 0.0
        %1096 = vmatpush.xpose.msra.mxu0 0.0
        %1097 = vmatpush.xpose.msra.mxu0 0.0
        %1098 = vmatpush.xpose.msra.mxu0 0.0
        %1099 = vmatpush.xpose.msra.mxu0 0.0
        %1100 = vmatpush.xpose.msra.mxu0 0.0
        %1101 = vmatpush.xpose.msra.mxu0 %v1084
        %1102 = vmatmul.f32.gmra.mxu0 %v1082
        %v1103 = vpop.f32.mrf.mxu0
        %v1104 = vadd.f32 0.0, %v1103
        %1105 = vdwg.mxu0
        %1106 = vrot.lane.b32.xlu0 %v824, 112
        %v1107 = vpop.permute.xlu0 %1106
        %1108 = vrot.lane.b32.xlu0 %v744, 112
        %v1109 = vpop.permute.xlu0 %1108
        %v1110 = vsel %vm825, %v1107, 0
        %v1112 = vsel %vm825, %v1109, 0
        %1114 = vmatpush.xpose.msra.mxu0 0.0
        %1115 = vmatpush.xpose.msra.mxu0 0.0
        %1116 = vmatpush.xpose.msra.mxu0 0.0
        %1117 = vmatpush.xpose.msra.mxu0 0.0
        %1118 = vmatpush.xpose.msra.mxu0 0.0
        %1119 = vmatpush.xpose.msra.mxu0 0.0
        %1120 = vmatpush.xpose.msra.mxu0 0.0
        %1121 = vmatpush.xpose.msra.mxu0 0.0
        %1122 = vmatpush.xpose.msra.mxu0 0.0
        %1123 = vmatpush.xpose.msra.mxu0 0.0
        %1124 = vmatpush.xpose.msra.mxu0 0.0
        %1125 = vmatpush.xpose.msra.mxu0 0.0
        %1126 = vmatpush.xpose.msra.mxu0 0.0
        %1127 = vmatpush.xpose.msra.mxu0 0.0
        %1128 = vmatpush.xpose.msra.mxu0 0.0
        %1129 = vmatpush.xpose.msra.mxu0 %v1112
        %1130 = vmatmul.f32.gmra.mxu0 %v1110
        %v1131 = vpop.f32.mrf.mxu0
        %v1132 = vadd.f32 0.0, %v1131
        %1133 = vdwg.mxu0
        %v1134 = vsel %vm825, %v1104, -inf
        %1135 = vmax.xlane.f32.xlu0 %v1134
        %v1136 = vpop.xlane.xlu0 %1135
        %v1137 = vsub.f32 %v1104, %v1136
        %v1138 = vmul.f32 %v1137, 1.442695
        %v1139 = vpow.pop %v1138
        %v1140 = vsel %vm825, %v1139, 0.0
        %1141 = vadd.xlane.f32.xlu0 %v1140
        %v1142 = vpop.xlane.xlu0 %1141
        %v1143 = vrcp.pop %v1142
        %v1144 = vmul.f32 %v1139, %v1143
        %v1145 = vsel %vm825, %v1132, -inf
        %1146 = vmax.xlane.f32.xlu0 %v1145
        %v1147 = vpop.xlane.xlu0 %1146
        %v1148 = vsub.f32 %v1132, %v1147
        %v1149 = vmul.f32 %v1148, 1.442695
        %v1150 = vpow.pop %v1149
        %v1151 = vsel %vm825, %v1150, 0.0
        %1152 = vadd.xlane.f32.xlu0 %v1151
        %v1153 = vpop.xlane.xlu0 %1152
        %v1154 = vrcp.pop %v1153
        %v1155 = vmul.f32 %v1150, %v1154
        %1156 = vrot.lane.b32.xlu0 %v797, 112
        %v1157 = vpop.permute.xlu0 %1156
        %v1160 = vsel %vm825, %v1155, 0
        %1162 = vmatpush.msra.mxu0 0.0
        %1163 = vmatpush.msra.mxu0 0.0
        %1164 = vmatpush.msra.mxu0 0.0
        %1165 = vmatpush.msra.mxu0 0.0
        %1166 = vmatpush.msra.mxu0 0.0
        %1167 = vmatpush.msra.mxu0 0.0
        %1168 = vmatpush.msra.mxu0 0.0
        %1169 = vmatpush.msra.mxu0 0.0
        %1170 = vmatpush.msra.mxu0 0.0
        %1171 = vmatpush.msra.mxu0 0.0
        %1172 = vmatpush.msra.mxu0 0.0
        %1173 = vmatpush.msra.mxu0 0.0
        %1174 = vmatpush.msra.mxu0 0.0
        %1175 = vmatpush.msra.mxu0 0.0
        %1176 = vmatpush.msra.mxu0 0.0
        %1177 = vmatpush.msra.mxu0 %v1157
        %1178 = vmatmul.f32.gmra.mxu0 %v1160
        %v1179 = vpop.f32.mrf.mxu0
        %v1180 = vadd.f32 0.0, %v1179
        %1181 = vdwg.mxu0
        %1182 = vrot.lane.b32.xlu0 %v821, 112
        %v1183 = vpop.permute.xlu0 %1182
        %v1186 = vsel %vm825, %v1144, 0
        %1188 = vmatpush.msra.mxu0 0.0
        %1189 = vmatpush.msra.mxu0 0.0
        %1190 = vmatpush.msra.mxu0 0.0
        %1191 = vmatpush.msra.mxu0 0.0
        %1192 = vmatpush.msra.mxu0 0.0
        %1193 = vmatpush.msra.mxu0 0.0
        %1194 = vmatpush.msra.mxu0 0.0
        %1195 = vmatpush.msra.mxu0 0.0
        %1196 = vmatpush.msra.mxu0 0.0
        %1197 = vmatpush.msra.mxu0 0.0
        %1198 = vmatpush.msra.mxu0 0.0
        %1199 = vmatpush.msra.mxu0 0.0
        %1200 = vmatpush.msra.mxu0 0.0
        %1201 = vmatpush.msra.mxu0 0.0
        %1202 = vmatpush.msra.mxu0 0.0
        %1203 = vmatpush.msra.mxu0 %v1183
        %1204 = vmatmul.f32.gmra.mxu0 %v1186
        %v1205 = vpop.f32.mrf.mxu0
        %v1206 = vadd.f32 %v1180, %v1205
        %1207 = vdwg.mxu0
        %1208 = vrot.lane.b32.xlu0 %v823, 104
        %v1209 = vpop.permute.xlu0 %1208
        %1210 = vrot.lane.b32.xlu0 %v768, 104
        %v1211 = vpop.permute.xlu0 %1210
        %v1212 = vsel %vm825, %v1209, 0
        %v1214 = vsel %vm825, %v1211, 0
        %1216 = vmatpush.xpose.msra.mxu0 0.0
        %1217 = vmatpush.xpose.msra.mxu0 0.0
        %1218 = vmatpush.xpose.msra.mxu0 0.0
        %1219 = vmatpush.xpose.msra.mxu0 0.0
        %1220 = vmatpush.xpose.msra.mxu0 0.0
        %1221 = vmatpush.xpose.msra.mxu0 0.0
        %1222 = vmatpush.xpose.msra.mxu0 0.0
        %1223 = vmatpush.xpose.msra.mxu0 0.0
        %1224 = vmatpush.xpose.msra.mxu0 0.0
        %1225 = vmatpush.xpose.msra.mxu0 0.0
        %1226 = vmatpush.xpose.msra.mxu0 0.0
        %1227 = vmatpush.xpose.msra.mxu0 0.0
        %1228 = vmatpush.xpose.msra.mxu0 0.0
        %1229 = vmatpush.xpose.msra.mxu0 0.0
        %1230 = vmatpush.xpose.msra.mxu0 0.0
        %1231 = vmatpush.xpose.msra.mxu0 %v1214
        %1232 = vmatmul.f32.gmra.mxu0 %v1212
        %v1233 = vpop.f32.mrf.mxu0
        %v1234 = vadd.f32 0.0, %v1233
        %1235 = vdwg.mxu0
        %1236 = vrot.lane.b32.xlu0 %v824, 104
        %v1237 = vpop.permute.xlu0 %1236
        %1238 = vrot.lane.b32.xlu0 %v744, 104
        %v1239 = vpop.permute.xlu0 %1238
        %v1240 = vsel %vm825, %v1237, 0
        %v1242 = vsel %vm825, %v1239, 0
        %1244 = vmatpush.xpose.msra.mxu0 0.0
        %1245 = vmatpush.xpose.msra.mxu0 0.0
        %1246 = vmatpush.xpose.msra.mxu0 0.0
        %1247 = vmatpush.xpose.msra.mxu0 0.0
        %1248 = vmatpush.xpose.msra.mxu0 0.0
        %1249 = vmatpush.xpose.msra.mxu0 0.0
        %1250 = vmatpush.xpose.msra.mxu0 0.0
        %1251 = vmatpush.xpose.msra.mxu0 0.0
        %1252 = vmatpush.xpose.msra.mxu0 0.0
        %1253 = vmatpush.xpose.msra.mxu0 0.0
        %1254 = vmatpush.xpose.msra.mxu0 0.0
        %1255 = vmatpush.xpose.msra.mxu0 0.0
        %1256 = vmatpush.xpose.msra.mxu0 0.0
        %1257 = vmatpush.xpose.msra.mxu0 0.0
        %1258 = vmatpush.xpose.msra.mxu0 0.0
        %1259 = vmatpush.xpose.msra.mxu0 %v1242
        %1260 = vmatmul.f32.gmra.mxu0 %v1240
        %v1261 = vpop.f32.mrf.mxu0
        %v1262 = vadd.f32 0.0, %v1261
        %1263 = vdwg.mxu0
        %v1264 = vsel %vm825, %v1234, -inf
        %1265 = vmax.xlane.f32.xlu0 %v1264
        %v1266 = vpop.xlane.xlu0 %1265
        %v1267 = vsub.f32 %v1234, %v1266
        %v1268 = vmul.f32 %v1267, 1.442695
        %v1269 = vpow.pop %v1268
        %v1270 = vsel %vm825, %v1269, 0.0
        %1271 = vadd.xlane.f32.xlu0 %v1270
        %v1272 = vpop.xlane.xlu0 %1271
        %v1273 = vrcp.pop %v1272
        %v1274 = vmul.f32 %v1269, %v1273
        %v1275 = vsel %vm825, %v1262, -inf
        %1276 = vmax.xlane.f32.xlu0 %v1275
        %v1277 = vpop.xlane.xlu0 %1276
        %v1278 = vsub.f32 %v1262, %v1277
        %v1279 = vmul.f32 %v1278, 1.442695
        %v1280 = vpow.pop %v1279
        %v1281 = vsel %vm825, %v1280, 0.0
        %1282 = vadd.xlane.f32.xlu0 %v1281
        %v1283 = vpop.xlane.xlu0 %1282
        %v1284 = vrcp.pop %v1283
        %v1285 = vmul.f32 %v1280, %v1284
        %1286 = vrot.lane.b32.xlu0 %v797, 104
        %v1287 = vpop.permute.xlu0 %1286
        %v1290 = vsel %vm825, %v1285, 0
        %1292 = vmatpush.msra.mxu0 0.0
        %1293 = vmatpush.msra.mxu0 0.0
        %1294 = vmatpush.msra.mxu0 0.0
        %1295 = vmatpush.msra.mxu0 0.0
        %1296 = vmatpush.msra.mxu0 0.0
        %1297 = vmatpush.msra.mxu0 0.0
        %1298 = vmatpush.msra.mxu0 0.0
        %1299 = vmatpush.msra.mxu0 0.0
        %1300 = vmatpush.msra.mxu0 0.0
        %1301 = vmatpush.msra.mxu0 0.0
        %1302 = vmatpush.msra.mxu0 0.0
        %1303 = vmatpush.msra.mxu0 0.0
        %1304 = vmatpush.msra.mxu0 0.0
        %1305 = vmatpush.msra.mxu0 0.0
        %1306 = vmatpush.msra.mxu0 0.0
        %1307 = vmatpush.msra.mxu0 %v1287
        %1308 = vmatmul.f32.gmra.mxu0 %v1290
        %v1309 = vpop.f32.mrf.mxu0
        %v1310 = vadd.f32 0.0, %v1309
        %1311 = vdwg.mxu0
        %1312 = vrot.lane.b32.xlu0 %v821, 104
        %v1313 = vpop.permute.xlu0 %1312
        %v1316 = vsel %vm825, %v1274, 0
        %1318 = vmatpush.msra.mxu0 0.0
        %1319 = vmatpush.msra.mxu0 0.0
        %1320 = vmatpush.msra.mxu0 0.0
        %1321 = vmatpush.msra.mxu0 0.0
        %1322 = vmatpush.msra.mxu0 0.0
        %1323 = vmatpush.msra.mxu0 0.0
        %1324 = vmatpush.msra.mxu0 0.0
        %1325 = vmatpush.msra.mxu0 0.0
        %1326 = vmatpush.msra.mxu0 0.0
        %1327 = vmatpush.msra.mxu0 0.0
        %1328 = vmatpush.msra.mxu0 0.0
        %1329 = vmatpush.msra.mxu0 0.0
        %1330 = vmatpush.msra.mxu0 0.0
        %1331 = vmatpush.msra.mxu0 0.0
        %1332 = vmatpush.msra.mxu0 0.0
        %1333 = vmatpush.msra.mxu0 %v1313
        %1334 = vmatmul.f32.gmra.mxu0 %v1316
        %v1335 = vpop.f32.mrf.mxu0
        %v1336 = vadd.f32 %v1310, %v1335
        %1337 = vdwg.mxu0
        %1339 = vrot.lane.b32.xlu0 %v1076, 8
        %v1340 = vpop.permute.xlu0 %1339
        %1343 = vrot.lane.b32.xlu0 %v1206, 16
        %v1344 = vpop.permute.xlu0 %1343
        %1347 = vrot.lane.b32.xlu0 %v1336, 24
        %v1348 = vpop.permute.xlu0 %1347
        %v1350 = vsel %vm825, %v944, %v1340
        %vm1351 = vcmask 130048
        %v1352 = vsel %vm1351, %v1350, %v1344
        %vm1353 = vcmask 195584
        %v1354 = vsel %vm1353, %v1352, %v1348
        %v1355 = vld [vmem:[#allocation17] sm:$0xff]
        %v1356 = vld [vmem:[#allocation17 + $0x8] sm:$0xff]
        %v1357 = vld [vmem:[#allocation17 + $0x10] sm:$0xff]
        %v1358 = vld [vmem:[#allocation17 + $0x18] sm:$0xff]
        %v1359 = vperm.slane %v662, 0
        %v1361 = vsel %vm669, %v1354, 0
        %1363 = vmatpush.msra.mxu0 0.0
        %1364 = vmatpush.msra.mxu0 0.0
        %1365 = vmatpush.msra.mxu0 0.0
        %1366 = vmatpush.msra.mxu0 0.0
        %1367 = vmatpush.msra.mxu0 0.0
        %1368 = vmatpush.msra.mxu0 0.0
        %1369 = vmatpush.msra.mxu0 0.0
        %1370 = vmatpush.msra.mxu0 0.0
        %1371 = vmatpush.msra.mxu0 0.0
        %1372 = vmatpush.msra.mxu0 0.0
        %1373 = vmatpush.msra.mxu0 0.0
        %1374 = vmatpush.msra.mxu0 0.0
        %1375 = vmatpush.msra.mxu0 %v1358
        %1376 = vmatpush.msra.mxu0 %v1357
        %1377 = vmatpush.msra.mxu0 %v1356
        %1378 = vmatpush.msra.mxu0 %v1355
        %1379 = vmatmul.f32.gmra.mxu0 %v1361
        %v1380 = vpop.f32.mrf.mxu0
        %v1381 = vadd.f32 %v1359, %v1380
        %1382 = vdwg.mxu0
        %1383 = vst.msk [vmem:[%s658] sm:$0xff] %vm669, %v1381
        %s1384 = sand.u32 %s308, 1
        %s1385 = scalar_lea.sflag [#allocation4], %s1384
        %s1386 = sand.u32 %s308, 1
        %s1387 = smul.addr %s1386, 8
        %s1388 = scalar_lea.vmem [#allocation19], %s1387
        // Predicated region
        $region105: #{tpu_custom_call.1} parent=63 // pred_check
          %p1389 = pneg %p318
        $region106: #{tpu_custom_call.1} parent=63 // pred_check_branch
          %1391 = sbr.rel (%p1389) target = $region108
        $region107: #{tpu_custom_call.1} parent=63 // pred_region
          %1393 = vsyncadd %s1385, 0
          %s1394 = smul.addr %s39, 8
          %s1395 = scalar_lea.hbm %s11, %s1394
          %s1397 = sshll.u32 %s1388, 4
          %s1398 = int_to_ptr.vmem [resolvable:$true] %s1397
          %s1399 = sshll.u32 %s1395, 4
          %s1400 = int_to_ptr.hbm [resolvable:$true] %s1399
          %1402 = dma.vmem_to_hbm [thread:$0]  %s1398, 128, %s1400, %s1385
        $region108: #{tpu_custom_call.1} parent=63 // pred_fallthru
          _
      $region64: #{tpu_custom_call.1} parent=5 // pred_fallthru
        _
      %p1403 = scmp.le.s32.totalorder 2, %s34
      // Predicated region
      $region109: #{tpu_custom_call.1} parent=5 // pred_check
        %p1404 = pneg %p1403
      $region110: #{tpu_custom_call.1} parent=5 // pred_check_branch
        %1406 = sbr.rel (%p1404) target = $region112
      $region111: #{tpu_custom_call.1} parent=5 // pred_region
        %s1407 = ssub.s32 %s34, 2
        // Predicated region
        $region113: #{tpu_custom_call.1} parent=111 // pred_check
          %p1408 = pneg %p324
        $region114: #{tpu_custom_call.1} parent=111 // pred_check_branch
          %1410 = sbr.rel (%p1408) target = $region116
        $region115: #{tpu_custom_call.1} parent=111 // pred_region
          %s1411 = sand.u32 %s309, 1
          %s1412 = scalar_lea.sflag [#allocation4], %s1411
          %s1413 = sand.u32 %s309, 1
          %s1414 = smul.addr %s1413, 8
          %s1415 = scalar_lea.vmem [#allocation19], %s1414
          %1417 = dma.done %s1412, 128
        $region116: #{tpu_custom_call.1} parent=111 // pred_fallthru
          _
      $region112: #{tpu_custom_call.1} parent=5 // pred_fallthru
        _
    $region6: #{tpu_custom_call.1} parent=1 // loop_footer
      %s38 = sadd.s32 1, %s34
    $region7: #{tpu_custom_call.1} parent=1 // loop_footer_branch
      %33 = sbr.rel target = $region3
    $region8: #{tpu_custom_call.1} parent=1 // loop_exit
      _
    %1418 = vsyncpa [#allocation3], 1
    %s1419 = scalar_lea.sflag [#allocation3], 1
    %1420 = vsyncpa %s1419, 1
    %1421 = vsyncpa [#allocation6], 1
    %s1422 = scalar_lea.sflag [#allocation6], 1
    %1423 = vsyncpa %s1422, 1
    %1424 = vsyncpa [#allocation9], 1
    %s1425 = scalar_lea.sflag [#allocation9], 1
    %1426 = vsyncpa %s1425, 1
    %1427 = vsyncpa [#allocation12], 1
    %s1428 = scalar_lea.sflag [#allocation12], 1
    %1429 = vsyncpa %s1428, 1
    %1430 = vsyncpa [#allocation15], 1
    %1431 = vsyncpa [#allocation18], 1
    %1432 = vsyncpa [#allocation4], 1
    %s1433 = scalar_lea.sflag [#allocation4], 1
    %1434 = vsyncpa %s1433, 1

</llo_original>
